<compile_context>
chip_gen: v6e
topology: v6e:2x2x1
jax: 0.10.0
libtpu: 0.0.40
codegen_flags: <defaults>
</compile_context>

<pallas_src>
import functools

import jax
import jax.numpy as jnp
from jax.experimental import pallas as pl
from jax.experimental.pallas import tpu as pltpu


# -----------------------------------------------------------------------------
# Fused kernel.
# -----------------------------------------------------------------------------
def _fused_lstmnet_kernel(x_ref, wih0_ref, whh0_ref, b0_ref,
                          wih1_ref, whh1_ref, b1_ref,
                          wfc_ref, bfc_ref, out_ref,
                          xp0_scr, h0_scr, xp1_scr,
                          *, seq_len, batch, hidden_dim, unroll):
    T, B, H = seq_len, batch, hidden_dim  # B is the padded batch (multiple of 8)
    w_dt = wih0_ref.dtype                  # bf16 weights -> bf16 MXU, f32 acc

    def gate_update(gates, c):
        # Gate column order pre-permuted in the wrapper: [i, f, o, g].
        sig = jax.nn.sigmoid(gates[:, :3 * H])   # one EUP push for i, f, o
        g_g = jnp.tanh(gates[:, 3 * H:])         # one EUP push for g
        i_g = sig[:, 0:H]
        f_g = sig[:, H:2 * H]
        o_g = sig[:, 2 * H:3 * H]
        c_new = f_g * c + i_g * g_g
        h_new = o_g * jnp.tanh(c_new)
        return h_new, c_new

    # ---- Pass A: layer-0 input projection (one big parallel matmul) ----
    xp0_scr[...] = (
        jnp.dot(x_ref[...].astype(w_dt), wih0_ref[...],
                preferred_element_type=jnp.float32)
        + b0_ref[...])                                     # (T*B, 4H)

    zero = jnp.zeros((B, H), jnp.float32)

    # ---- Pass B: layer-0 recurrence (1 matmul + gate math per step) ----
    def step0(t, carry):
        h, c = carry
        r = pl.multiple_of(t * B, 8)                       # tile-aligned row start
        gates = xp0_scr[pl.ds(r, B), :] + jnp.dot(
            h.astype(w_dt), whh0_ref[...], preferred_element_type=jnp.float32)
        h, c = gate_update(gates, c)
        h0_scr[pl.ds(r, B), :] = h                         # stash h0 sequence
        return (h, c)

    jax.lax.fori_loop(0, T, step0, (zero, zero), unroll=unroll)

    # ---- Pass C: layer-1 input projection hoisted over the whole h0 sequence ----
    xp1_scr[...] = (
        jnp.dot(h0_scr[...].astype(w_dt), wih1_ref[...],
                preferred_element_type=jnp.float32)
        + b1_ref[...])                                     # (T*B, 4H)

    # ---- Pass D: layer-1 recurrence ----
    def step1(t, carry):
        h, c = carry
        r = pl.multiple_of(t * B, 8)
        gates = xp1_scr[pl.ds(r, B), :] + jnp.dot(
            h.astype(w_dt), whh1_ref[...], preferred_element_type=jnp.float32)
        return gate_update(gates, c)

    h1_last, _ = jax.lax.fori_loop(0, T, step1, (zero, zero), unroll=unroll)

    # ---- Pass E: FC + numerically-stable log_softmax on last hidden state ----
    logits = (jnp.dot(h1_last.astype(w_dt), wfc_ref[...],
                      preferred_element_type=jnp.float32)
              + bfc_ref[...])
    m = jnp.max(logits, axis=-1, keepdims=True)
    s = logits - m
    lse = jnp.log(jnp.sum(jnp.exp(s), axis=-1, keepdims=True))
    out_ref[...] = s - lse


# -----------------------------------------------------------------------------
# Wrapper.
# -----------------------------------------------------------------------------
def lstmnet_forward_fn(x, wih0, whh0, b0, wih1, whh1, b1, wfc, bfc):
    """x: (T, B, D) f32, time-major.  Weights in kernel layout (see
    prepare_kernel_weights).  Returns (B, O) log-probabilities."""
    T, B, D = x.shape
    H = whh0.shape[0]
    O = wfc.shape[1]

    # Pad batch to a full sublane tile (8) so per-step scratch slices are aligned.
    B_pad = max(8, ((B + 7) // 8) * 8)
    if B_pad != B:
        x = jnp.pad(x, ((0, 0), (0, B_pad - B), (0, 0)))
    x_flat = x.reshape(T * B_pad, D)

    unroll = True if T <= 16 else 8   # full unroll only for small T (avoid spills)

    kernel = functools.partial(_fused_lstmnet_kernel,
                               seq_len=T, batch=B_pad, hidden_dim=H,
                               unroll=unroll)

    # Explicit VMEM budget: scratches + inputs, with headroom (caps well below
    # v7x's 64 MiB physical VMEM).
    scratch_bytes = (2 * T * B_pad * 4 * H + T * B_pad * H) * 4
    vmem_limit = int(min(64 * 1024 * 1024,
                         max(32 * 1024 * 1024, 4 * scratch_bytes)))

    out = pl.pallas_call(
        kernel,
        out_shape=jax.ShapeDtypeStruct((B_pad, O), jnp.float32),
        grid=(1,),
        in_specs=[
            pl.BlockSpec((T * B_pad, D), lambda i: (0, 0)),   # x (flattened)
            pl.BlockSpec((D, 4 * H), lambda i: (0, 0)),        # W_ih^T layer 0
            pl.BlockSpec((H, 4 * H), lambda i: (0, 0)),        # W_hh^T layer 0
            pl.BlockSpec((1, 4 * H), lambda i: (0, 0)),        # bias layer 0
            pl.BlockSpec((H, 4 * H), lambda i: (0, 0)),        # W_ih^T layer 1
            pl.BlockSpec((H, 4 * H), lambda i: (0, 0)),        # W_hh^T layer 1
            pl.BlockSpec((1, 4 * H), lambda i: (0, 0)),        # bias layer 1
            pl.BlockSpec((H, O), lambda i: (0, 0)),            # W_fc^T
            pl.BlockSpec((1, O), lambda i: (0, 0)),            # b_fc
        ],
        out_specs=pl.BlockSpec((B_pad, O), lambda i: (0, 0)),
        scratch_shapes=[
            pltpu.VMEM((T * B_pad, 4 * H), jnp.float32),   # layer-0 x-projection
            pltpu.VMEM((T * B_pad, H), jnp.float32),       # layer-0 h sequence
            pltpu.VMEM((T * B_pad, 4 * H), jnp.float32),   # layer-1 input proj.
        ],
        compiler_params=pltpu.CompilerParams(
            dimension_semantics=("arbitrary",),
            vmem_limit_bytes=vmem_limit),
    )(x_flat, wih0, whh0, b0, wih1, whh1, b1, wfc, bfc)

    return out[:B]


lstmnet_forward = jax.jit(lstmnet_forward_fn)


# -----------------------------------------------------------------------------
# PyTorch-layout parameter init + conversion to the kernel layout.
# -----------------------------------------------------------------------------
def init_params(key, input_dim, hidden_dim, output_dim, num_layers=2):
    """PyTorch layout: W_ih (4H, D_in), W_hh (4H, H), gate order [i, f, g, o]."""
    k = 1.0 / float(hidden_dim) ** 0.5
    lstm = []
    for layer in range(num_layers):
        d_in = input_dim if layer == 0 else hidden_dim
        key, k1, k2, k3, k4 = jax.random.split(key, 5)
        w_ih = jax.random.uniform(k1, (4 * hidden_dim, d_in), jnp.float32, -k, k)
        w_hh = jax.random.uniform(k2, (4 * hidden_dim, hidden_dim), jnp.float32, -k, k)
        b_ih = jax.random.uniform(k3, (4 * hidden_dim,), jnp.float32, -k, k)
        b_hh = jax.random.uniform(k4, (4 * hidden_dim,), jnp.float32, -k, k)
        lstm.append((w_ih, w_hh, b_ih, b_hh))
    key, k1, k2 = jax.random.split(key, 3)
    w_fc = jax.random.uniform(k1, (output_dim, hidden_dim), jnp.float32, -k, k)
    b_fc = jax.random.uniform(k2, (output_dim,), jnp.float32, -k, k)
    return {"lstm": lstm, "fc": (w_fc, b_fc)}


def prepare_kernel_weights(params, dtype=jnp.float32):
    """PyTorch weights -> kernel layout:
       * gate rows permuted [i,f,g,o] -> [i,f,o,g] (one sigmoid over 3H, one tanh)
       * transposed to lane-dense (K, 4H) / (H, O)
       * b_ih + b_hh folded into one (1, 4H) bias
       Pass dtype=jnp.bfloat16 on v6e/v7x for a bf16 MXU path (f32 accumulate)."""
    def permute(w):
        H = w.shape[0] // 4
        i, f, g, o = w[0:H], w[H:2 * H], w[2 * H:3 * H], w[3 * H:4 * H]
        return jnp.concatenate([i, f, o, g], axis=0)

    out = []
    for (w_ih, w_hh, b_ih, b_hh) in params["lstm"]:
        out.append(permute(w_ih).T.astype(dtype))
        out.append(permute(w_hh).T.astype(dtype))
        out.append(permute(b_ih + b_hh).reshape(1, -1).astype(jnp.float32))
    w_fc, b_fc = params["fc"]
    out.append(w_fc.T.astype(dtype))
    out.append(b_fc.reshape(1, -1).astype(jnp.float32))
    return tuple(out)


# -----------------------------------------------------------------------------
# Pure-JAX reference (PyTorch semantics, for correctness check only).
# -----------------------------------------------------------------------------
def reference_forward(x, params):
    def layer(xs, w_ih, w_hh, b_ih, b_hh):
        B = xs.shape[1]
        H = w_hh.shape[1]

        def step(carry, x_t):
            h, c = carry
            g = x_t @ w_ih.T + h @ w_hh.T + b_ih + b_hh
            i = jax.nn.sigmoid(g[:, 0 * H:1 * H])
            f = jax.nn.sigmoid(g[:, 1 * H:2 * H])
            gg = jnp.tanh(g[:, 2 * H:3 * H])
            o = jax.nn.sigmoid(g[:, 3 * H:4 * H])
            c = f * c + i * gg
            h = o * jnp.tanh(c)
            return (h, c), h

        init = (jnp.zeros((B, H), jnp.float32), jnp.zeros((B, H), jnp.float32))
        _, hs = jax.lax.scan(step, init, xs)
        return hs

    h = x
    for lp in params["lstm"]:
        h = layer(h, *lp)          # inter-layer dropout: eval-mode no-op
    w_fc, b_fc = params["fc"]
    logits = h[-1] @ w_fc.T + b_fc
    return jax.nn.log_softmax(logits, axis=-1)


if __name__ == "__main__":
    # Small shapes consistent with the module's forward.
    input_dim, hidden_dim, output_dim, num_layers = 4, 32, 10, 2
    seq_len, batch = 8, 2

    key = jax.random.PRNGKey(0)
    key, xk = jax.random.split(key)
    # (seq_len, batch, input_dim) — PyTorch nn.LSTM default time-major layout
    x = jax.random.normal(xk, (seq_len, batch, input_dim), jnp.float32)

    params = init_params(key, input_dim, hidden_dim, output_dim, num_layers)
    kernel_weights = prepare_kernel_weights(params)   # f32; bf16 is drop-in on v6e/v7x

    scores = lstmnet_forward(x, *kernel_weights)
    scores = jax.block_until_ready(scores)

    assert scores.shape == (batch, output_dim)
    # log_softmax rows must sum to ~1 in probability space
    assert jnp.allclose(jnp.sum(jnp.exp(scores), axis=-1), 1.0, atol=1e-5)
    # match the pure-JAX (PyTorch-semantics) reference
    ref = reference_forward(x, params)
    assert jnp.allclose(scores, ref, atol=1e-2, rtol=1e-2)

    print("KERNEL_OK")
</pallas_src>

<mosaic_0001>
module attributes {stable_mosaic.version = 11 : i64} {
  func.func @_fused_lstmnet_kernel(%arg0: i32, %arg1: memref<64x4xf32, #tpu.memory_space<vmem>>, %arg2: memref<4x128xf32, #tpu.memory_space<vmem>>, %arg3: memref<32x128xf32, #tpu.memory_space<vmem>>, %arg4: memref<1x128xf32, #tpu.memory_space<vmem>>, %arg5: memref<32x128xf32, #tpu.memory_space<vmem>>, %arg6: memref<32x128xf32, #tpu.memory_space<vmem>>, %arg7: memref<1x128xf32, #tpu.memory_space<vmem>>, %arg8: memref<32x10xf32, #tpu.memory_space<vmem>>, %arg9: memref<1x10xf32, #tpu.memory_space<vmem>>, %arg10: memref<8x10xf32, #tpu.memory_space<vmem>>, %arg11: memref<64x128xf32, #tpu.memory_space<vmem>>, %arg12: memref<64x32xf32, #tpu.memory_space<vmem>>, %arg13: memref<64x128xf32, #tpu.memory_space<vmem>>) attributes {dimension_semantics = [#tpu.dimension_semantics<arbitrary>], iteration_bounds = array<i64: 1>, scalar_prefetch = 0 : i64, scratch_operands = 3 : i64, tpu.core_type = #tpu.core_type<tc>, window_params = [{pipeline_mode = #tpu.pipeline_mode<synchronous>, transform_indices = @transform_0, window_bounds = array<i64: 64, 4>}, {pipeline_mode = #tpu.pipeline_mode<synchronous>, transform_indices = @transform_1, window_bounds = array<i64: 4, 128>}, {pipeline_mode = #tpu.pipeline_mode<synchronous>, transform_indices = @transform_2, window_bounds = array<i64: 32, 128>}, {pipeline_mode = #tpu.pipeline_mode<synchronous>, transform_indices = @transform_3, window_bounds = array<i64: 1, 128>}, {pipeline_mode = #tpu.pipeline_mode<synchronous>, transform_indices = @transform_4, window_bounds = array<i64: 32, 128>}, {pipeline_mode = #tpu.pipeline_mode<synchronous>, transform_indices = @transform_5, window_bounds = array<i64: 32, 128>}, {pipeline_mode = #tpu.pipeline_mode<synchronous>, transform_indices = @transform_6, window_bounds = array<i64: 1, 128>}, {pipeline_mode = #tpu.pipeline_mode<synchronous>, transform_indices = @transform_7, window_bounds = array<i64: 32, 10>}, {pipeline_mode = #tpu.pipeline_mode<synchronous>, transform_indices = @transform_8, window_bounds = array<i64: 1, 10>}, {pipeline_mode = #tpu.pipeline_mode<synchronous>, transform_indices = @transform_9, window_bounds = array<i64: 8, 10>}]} {
    %c0 = arith.constant 0 : index
    %c0_0 = arith.constant 0 : index
    %0 = vector.load %arg1[%c0, %c0_0] : memref<64x4xf32, #tpu.memory_space<vmem>>, vector<64x4xf32>
    %c0_1 = arith.constant 0 : index
    %c0_2 = arith.constant 0 : index
    %1 = vector.load %arg2[%c0_1, %c0_2] : memref<4x128xf32, #tpu.memory_space<vmem>>, vector<4x128xf32>
    %cst = arith.constant dense<0.000000e+00> : vector<64x128xf32>
    %2 = tpu.matmul %0, %1, %cst {dimension_numbers = #tpu.dot_dimension_numbers<[1], [0], [0], [1], [0, 0, 1, 1], [], []>} : vector<64x4xf32>, vector<4x128xf32>, vector<64x128xf32> -> vector<64x128xf32>
    %c0_3 = arith.constant 0 : index
    %c0_4 = arith.constant 0 : index
    %3 = vector.load %arg4[%c0_3, %c0_4] : memref<1x128xf32, #tpu.memory_space<vmem>>, vector<1x128xf32>
    %4 = vector.broadcast %3 : vector<1x128xf32> to vector<64x128xf32>
    %5 = arith.addf %2, %4 : vector<64x128xf32>
    %c0_5 = arith.constant 0 : index
    %c0_6 = arith.constant 0 : index
    %6 = vector.load %arg11[%c0_5, %c0_6] : memref<64x128xf32, #tpu.memory_space<vmem>>, vector<64x128xf32>
    tpu.vector_store %arg11[%c0_5, %c0_6], %5 {strides = array<i32>} : memref<64x128xf32, #tpu.memory_space<vmem>>, vector<64x128xf32>,
    %cst_7 = arith.constant 0.000000e+00 : f32
    %7 = vector.broadcast %cst_7 : f32 to vector<8x32xf32>
    %c0_i32 = arith.constant 0 : i32
    %c8_i32 = arith.constant 8 : i32
    %8 = arith.muli %c0_i32, %c8_i32 : i32
    %9 = tpu.assume_multiple %8, 8 : i32
    %10 = arith.index_cast %9 : i32 to index
    %c0_8 = arith.constant 0 : index
    %11 = vector.load %arg11[%10, %c0_8] : memref<64x128xf32, #tpu.memory_space<vmem>>, vector<8x128xf32>
    %c0_9 = arith.constant 0 : index
    %c0_10 = arith.constant 0 : index
    %12 = vector.load %arg3[%c0_9, %c0_10] : memref<32x128xf32, #tpu.memory_space<vmem>>, vector<32x128xf32>
    %cst_11 = arith.constant dense<0.000000e+00> : vector<8x128xf32>
    %13 = tpu.matmul %7, %12, %cst_11 {dimension_numbers = #tpu.dot_dimension_numbers<[1], [0], [0], [1], [0, 0, 1, 1], [], []>} : vector<8x32xf32>, vector<32x128xf32>, vector<8x128xf32> -> vector<8x128xf32>
    %14 = arith.addf %11, %13 : vector<8x128xf32>
    %15 = vector.extract_strided_slice %14 {offsets = [0, 0], sizes = [8, 96], strides = [1, 1]} : vector<8x128xf32> to vector<8x96xf32>
    %16 = arith.negf %15 : vector<8x96xf32>
    %17 = math.exp %16 : vector<8x96xf32>
    %cst_12 = arith.constant 1.000000e+00 : f32
    %18 = vector.broadcast %cst_12 : f32 to vector<8x96xf32>
    %19 = arith.addf %18, %17 : vector<8x96xf32>
    %20 = arith.divf %18, %19 : vector<8x96xf32>
    %21 = vector.extract_strided_slice %14 {offsets = [0, 96], sizes = [8, 32], strides = [1, 1]} : vector<8x128xf32> to vector<8x32xf32>
    %22 = math.tanh %21 : vector<8x32xf32>
    %23 = vector.extract_strided_slice %20 {offsets = [0, 0], sizes = [8, 32], strides = [1, 1]} : vector<8x96xf32> to vector<8x32xf32>
    %24 = vector.extract_strided_slice %20 {offsets = [0, 32], sizes = [8, 32], strides = [1, 1]} : vector<8x96xf32> to vector<8x32xf32>
    %25 = vector.extract_strided_slice %20 {offsets = [0, 64], sizes = [8, 32], strides = [1, 1]} : vector<8x96xf32> to vector<8x32xf32>
    %26 = arith.mulf %24, %7 : vector<8x32xf32>
    %27 = arith.mulf %23, %22 : vector<8x32xf32>
    %28 = arith.addf %26, %27 : vector<8x32xf32>
    %29 = math.tanh %28 : vector<8x32xf32>
    %30 = arith.mulf %25, %29 : vector<8x32xf32>
    %31 = arith.index_cast %9 : i32 to index
    %c0_13 = arith.constant 0 : index
    %32 = vector.load %arg12[%31, %c0_13] : memref<64x32xf32, #tpu.memory_space<vmem>>, vector<8x32xf32>
    tpu.vector_store %arg12[%31, %c0_13], %30 {strides = array<i32>} : memref<64x32xf32, #tpu.memory_space<vmem>>, vector<8x32xf32>,
    %c1_i32 = arith.constant 1 : i32
    %c8_i32_14 = arith.constant 8 : i32
    %33 = arith.muli %c1_i32, %c8_i32_14 : i32
    %34 = tpu.assume_multiple %33, 8 : i32
    %35 = arith.index_cast %34 : i32 to index
    %c0_15 = arith.constant 0 : index
    %36 = vector.load %arg11[%35, %c0_15] : memref<64x128xf32, #tpu.memory_space<vmem>>, vector<8x128xf32>
    %c0_16 = arith.constant 0 : index
    %c0_17 = arith.constant 0 : index
    %37 = vector.load %arg3[%c0_16, %c0_17] : memref<32x128xf32, #tpu.memory_space<vmem>>, vector<32x128xf32>
    %cst_18 = arith.constant dense<0.000000e+00> : vector<8x128xf32>
    %38 = tpu.matmul %30, %37, %cst_18 {dimension_numbers = #tpu.dot_dimension_numbers<[1], [0], [0], [1], [0, 0, 1, 1], [], []>} : vector<8x32xf32>, vector<32x128xf32>, vector<8x128xf32> -> vector<8x128xf32>
    %39 = arith.addf %36, %38 : vector<8x128xf32>
    %40 = vector.extract_strided_slice %39 {offsets = [0, 0], sizes = [8, 96], strides = [1, 1]} : vector<8x128xf32> to vector<8x96xf32>
    %41 = arith.negf %40 : vector<8x96xf32>
    %42 = math.exp %41 : vector<8x96xf32>
    %cst_19 = arith.constant 1.000000e+00 : f32
    %43 = vector.broadcast %cst_19 : f32 to vector<8x96xf32>
    %44 = arith.addf %43, %42 : vector<8x96xf32>
    %45 = arith.divf %43, %44 : vector<8x96xf32>
    %46 = vector.extract_strided_slice %39 {offsets = [0, 96], sizes = [8, 32], strides = [1, 1]} : vector<8x128xf32> to vector<8x32xf32>
    %47 = math.tanh %46 : vector<8x32xf32>
    %48 = vector.extract_strided_slice %45 {offsets = [0, 0], sizes = [8, 32], strides = [1, 1]} : vector<8x96xf32> to vector<8x32xf32>
    %49 = vector.extract_strided_slice %45 {offsets = [0, 32], sizes = [8, 32], strides = [1, 1]} : vector<8x96xf32> to vector<8x32xf32>
    %50 = vector.extract_strided_slice %45 {offsets = [0, 64], sizes = [8, 32], strides = [1, 1]} : vector<8x96xf32> to vector<8x32xf32>
    %51 = arith.mulf %49, %28 : vector<8x32xf32>
    %52 = arith.mulf %48, %47 : vector<8x32xf32>
    %53 = arith.addf %51, %52 : vector<8x32xf32>
    %54 = math.tanh %53 : vector<8x32xf32>
    %55 = arith.mulf %50, %54 : vector<8x32xf32>
    %56 = arith.index_cast %34 : i32 to index
    %c0_20 = arith.constant 0 : index
    %57 = vector.load %arg12[%56, %c0_20] : memref<64x32xf32, #tpu.memory_space<vmem>>, vector<8x32xf32>
    tpu.vector_store %arg12[%56, %c0_20], %55 {strides = array<i32>} : memref<64x32xf32, #tpu.memory_space<vmem>>, vector<8x32xf32>,
    %c2_i32 = arith.constant 2 : i32
    %c8_i32_21 = arith.constant 8 : i32
    %58 = arith.muli %c2_i32, %c8_i32_21 : i32
    %59 = tpu.assume_multiple %58, 8 : i32
    %60 = arith.index_cast %59 : i32 to index
    %c0_22 = arith.constant 0 : index
    %61 = vector.load %arg11[%60, %c0_22] : memref<64x128xf32, #tpu.memory_space<vmem>>, vector<8x128xf32>
    %c0_23 = arith.constant 0 : index
    %c0_24 = arith.constant 0 : index
    %62 = vector.load %arg3[%c0_23, %c0_24] : memref<32x128xf32, #tpu.memory_space<vmem>>, vector<32x128xf32>
    %cst_25 = arith.constant dense<0.000000e+00> : vector<8x128xf32>
    %63 = tpu.matmul %55, %62, %cst_25 {dimension_numbers = #tpu.dot_dimension_numbers<[1], [0], [0], [1], [0, 0, 1, 1], [], []>} : vector<8x32xf32>, vector<32x128xf32>, vector<8x128xf32> -> vector<8x128xf32>
    %64 = arith.addf %61, %63 : vector<8x128xf32>
    %65 = vector.extract_strided_slice %64 {offsets = [0, 0], sizes = [8, 96], strides = [1, 1]} : vector<8x128xf32> to vector<8x96xf32>
    %66 = arith.negf %65 : vector<8x96xf32>
    %67 = math.exp %66 : vector<8x96xf32>
    %cst_26 = arith.constant 1.000000e+00 : f32
    %68 = vector.broadcast %cst_26 : f32 to vector<8x96xf32>
    %69 = arith.addf %68, %67 : vector<8x96xf32>
    %70 = arith.divf %68, %69 : vector<8x96xf32>
    %71 = vector.extract_strided_slice %64 {offsets = [0, 96], sizes = [8, 32], strides = [1, 1]} : vector<8x128xf32> to vector<8x32xf32>
    %72 = math.tanh %71 : vector<8x32xf32>
    %73 = vector.extract_strided_slice %70 {offsets = [0, 0], sizes = [8, 32], strides = [1, 1]} : vector<8x96xf32> to vector<8x32xf32>
    %74 = vector.extract_strided_slice %70 {offsets = [0, 32], sizes = [8, 32], strides = [1, 1]} : vector<8x96xf32> to vector<8x32xf32>
    %75 = vector.extract_strided_slice %70 {offsets = [0, 64], sizes = [8, 32], strides = [1, 1]} : vector<8x96xf32> to vector<8x32xf32>
    %76 = arith.mulf %74, %53 : vector<8x32xf32>
    %77 = arith.mulf %73, %72 : vector<8x32xf32>
    %78 = arith.addf %76, %77 : vector<8x32xf32>
    %79 = math.tanh %78 : vector<8x32xf32>
    %80 = arith.mulf %75, %79 : vector<8x32xf32>
    %81 = arith.index_cast %59 : i32 to index
    %c0_27 = arith.constant 0 : index
    %82 = vector.load %arg12[%81, %c0_27] : memref<64x32xf32, #tpu.memory_space<vmem>>, vector<8x32xf32>
    tpu.vector_store %arg12[%81, %c0_27], %80 {strides = array<i32>} : memref<64x32xf32, #tpu.memory_space<vmem>>, vector<8x32xf32>,
    %c3_i32 = arith.constant 3 : i32
    %c8_i32_28 = arith.constant 8 : i32
    %83 = arith.muli %c3_i32, %c8_i32_28 : i32
    %84 = tpu.assume_multiple %83, 8 : i32
    %85 = arith.index_cast %84 : i32 to index
    %c0_29 = arith.constant 0 : index
    %86 = vector.load %arg11[%85, %c0_29] : memref<64x128xf32, #tpu.memory_space<vmem>>, vector<8x128xf32>
    %c0_30 = arith.constant 0 : index
    %c0_31 = arith.constant 0 : index
    %87 = vector.load %arg3[%c0_30, %c0_31] : memref<32x128xf32, #tpu.memory_space<vmem>>, vector<32x128xf32>
    %cst_32 = arith.constant dense<0.000000e+00> : vector<8x128xf32>
    %88 = tpu.matmul %80, %87, %cst_32 {dimension_numbers = #tpu.dot_dimension_numbers<[1], [0], [0], [1], [0, 0, 1, 1], [], []>} : vector<8x32xf32>, vector<32x128xf32>, vector<8x128xf32> -> vector<8x128xf32>
    %89 = arith.addf %86, %88 : vector<8x128xf32>
    %90 = vector.extract_strided_slice %89 {offsets = [0, 0], sizes = [8, 96], strides = [1, 1]} : vector<8x128xf32> to vector<8x96xf32>
    %91 = arith.negf %90 : vector<8x96xf32>
    %92 = math.exp %91 : vector<8x96xf32>
    %cst_33 = arith.constant 1.000000e+00 : f32
    %93 = vector.broadcast %cst_33 : f32 to vector<8x96xf32>
    %94 = arith.addf %93, %92 : vector<8x96xf32>
    %95 = arith.divf %93, %94 : vector<8x96xf32>
    %96 = vector.extract_strided_slice %89 {offsets = [0, 96], sizes = [8, 32], strides = [1, 1]} : vector<8x128xf32> to vector<8x32xf32>
    %97 = math.tanh %96 : vector<8x32xf32>
    %98 = vector.extract_strided_slice %95 {offsets = [0, 0], sizes = [8, 32], strides = [1, 1]} : vector<8x96xf32> to vector<8x32xf32>
    %99 = vector.extract_strided_slice %95 {offsets = [0, 32], sizes = [8, 32], strides = [1, 1]} : vector<8x96xf32> to vector<8x32xf32>
    %100 = vector.extract_strided_slice %95 {offsets = [0, 64], sizes = [8, 32], strides = [1, 1]} : vector<8x96xf32> to vector<8x32xf32>
    %101 = arith.mulf %99, %78 : vector<8x32xf32>
    %102 = arith.mulf %98, %97 : vector<8x32xf32>
    %103 = arith.addf %101, %102 : vector<8x32xf32>
    %104 = math.tanh %103 : vector<8x32xf32>
    %105 = arith.mulf %100, %104 : vector<8x32xf32>
    %106 = arith.index_cast %84 : i32 to index
    %c0_34 = arith.constant 0 : index
    %107 = vector.load %arg12[%106, %c0_34] : memref<64x32xf32, #tpu.memory_space<vmem>>, vector<8x32xf32>
    tpu.vector_store %arg12[%106, %c0_34], %105 {strides = array<i32>} : memref<64x32xf32, #tpu.memory_space<vmem>>, vector<8x32xf32>,
    %c4_i32 = arith.constant 4 : i32
    %c8_i32_35 = arith.constant 8 : i32
    %108 = arith.muli %c4_i32, %c8_i32_35 : i32
    %109 = tpu.assume_multiple %108, 8 : i32
    %110 = arith.index_cast %109 : i32 to index
    %c0_36 = arith.constant 0 : index
    %111 = vector.load %arg11[%110, %c0_36] : memref<64x128xf32, #tpu.memory_space<vmem>>, vector<8x128xf32>
    %c0_37 = arith.constant 0 : index
    %c0_38 = arith.constant 0 : index
    %112 = vector.load %arg3[%c0_37, %c0_38] : memref<32x128xf32, #tpu.memory_space<vmem>>, vector<32x128xf32>
    %cst_39 = arith.constant dense<0.000000e+00> : vector<8x128xf32>
    %113 = tpu.matmul %105, %112, %cst_39 {dimension_numbers = #tpu.dot_dimension_numbers<[1], [0], [0], [1], [0, 0, 1, 1], [], []>} : vector<8x32xf32>, vector<32x128xf32>, vector<8x128xf32> -> vector<8x128xf32>
    %114 = arith.addf %111, %113 : vector<8x128xf32>
    %115 = vector.extract_strided_slice %114 {offsets = [0, 0], sizes = [8, 96], strides = [1, 1]} : vector<8x128xf32> to vector<8x96xf32>
    %116 = arith.negf %115 : vector<8x96xf32>
    %117 = math.exp %116 : vector<8x96xf32>
    %cst_40 = arith.constant 1.000000e+00 : f32
    %118 = vector.broadcast %cst_40 : f32 to vector<8x96xf32>
    %119 = arith.addf %118, %117 : vector<8x96xf32>
    %120 = arith.divf %118, %119 : vector<8x96xf32>
    %121 = vector.extract_strided_slice %114 {offsets = [0, 96], sizes = [8, 32], strides = [1, 1]} : vector<8x128xf32> to vector<8x32xf32>
    %122 = math.tanh %121 : vector<8x32xf32>
    %123 = vector.extract_strided_slice %120 {offsets = [0, 0], sizes = [8, 32], strides = [1, 1]} : vector<8x96xf32> to vector<8x32xf32>
    %124 = vector.extract_strided_slice %120 {offsets = [0, 32], sizes = [8, 32], strides = [1, 1]} : vector<8x96xf32> to vector<8x32xf32>
    %125 = vector.extract_strided_slice %120 {offsets = [0, 64], sizes = [8, 32], strides = [1, 1]} : vector<8x96xf32> to vector<8x32xf32>
    %126 = arith.mulf %124, %103 : vector<8x32xf32>
    %127 = arith.mulf %123, %122 : vector<8x32xf32>
    %128 = arith.addf %126, %127 : vector<8x32xf32>
    %129 = math.tanh %128 : vector<8x32xf32>
    %130 = arith.mulf %125, %129 : vector<8x32xf32>
    %131 = arith.index_cast %109 : i32 to index
    %c0_41 = arith.constant 0 : index
    %132 = vector.load %arg12[%131, %c0_41] : memref<64x32xf32, #tpu.memory_space<vmem>>, vector<8x32xf32>
    tpu.vector_store %arg12[%131, %c0_41], %130 {strides = array<i32>} : memref<64x32xf32, #tpu.memory_space<vmem>>, vector<8x32xf32>,
    %c5_i32 = arith.constant 5 : i32
    %c8_i32_42 = arith.constant 8 : i32
    %133 = arith.muli %c5_i32, %c8_i32_42 : i32
    %134 = tpu.assume_multiple %133, 8 : i32
    %135 = arith.index_cast %134 : i32 to index
    %c0_43 = arith.constant 0 : index
    %136 = vector.load %arg11[%135, %c0_43] : memref<64x128xf32, #tpu.memory_space<vmem>>, vector<8x128xf32>
    %c0_44 = arith.constant 0 : index
    %c0_45 = arith.constant 0 : index
    %137 = vector.load %arg3[%c0_44, %c0_45] : memref<32x128xf32, #tpu.memory_space<vmem>>, vector<32x128xf32>
    %cst_46 = arith.constant dense<0.000000e+00> : vector<8x128xf32>
    %138 = tpu.matmul %130, %137, %cst_46 {dimension_numbers = #tpu.dot_dimension_numbers<[1], [0], [0], [1], [0, 0, 1, 1], [], []>} : vector<8x32xf32>, vector<32x128xf32>, vector<8x128xf32> -> vector<8x128xf32>
    %139 = arith.addf %136, %138 : vector<8x128xf32>
    %140 = vector.extract_strided_slice %139 {offsets = [0, 0], sizes = [8, 96], strides = [1, 1]} : vector<8x128xf32> to vector<8x96xf32>
    %141 = arith.negf %140 : vector<8x96xf32>
    %142 = math.exp %141 : vector<8x96xf32>
    %cst_47 = arith.constant 1.000000e+00 : f32
    %143 = vector.broadcast %cst_47 : f32 to vector<8x96xf32>
    %144 = arith.addf %143, %142 : vector<8x96xf32>
    %145 = arith.divf %143, %144 : vector<8x96xf32>
    %146 = vector.extract_strided_slice %139 {offsets = [0, 96], sizes = [8, 32], strides = [1, 1]} : vector<8x128xf32> to vector<8x32xf32>
    %147 = math.tanh %146 : vector<8x32xf32>
    %148 = vector.extract_strided_slice %145 {offsets = [0, 0], sizes = [8, 32], strides = [1, 1]} : vector<8x96xf32> to vector<8x32xf32>
    %149 = vector.extract_strided_slice %145 {offsets = [0, 32], sizes = [8, 32], strides = [1, 1]} : vector<8x96xf32> to vector<8x32xf32>
    %150 = vector.extract_strided_slice %145 {offsets = [0, 64], sizes = [8, 32], strides = [1, 1]} : vector<8x96xf32> to vector<8x32xf32>
    %151 = arith.mulf %149, %128 : vector<8x32xf32>
    %152 = arith.mulf %148, %147 : vector<8x32xf32>
    %153 = arith.addf %151, %152 : vector<8x32xf32>
    %154 = math.tanh %153 : vector<8x32xf32>
    %155 = arith.mulf %150, %154 : vector<8x32xf32>
    %156 = arith.index_cast %134 : i32 to index
    %c0_48 = arith.constant 0 : index
    %157 = vector.load %arg12[%156, %c0_48] : memref<64x32xf32, #tpu.memory_space<vmem>>, vector<8x32xf32>
    tpu.vector_store %arg12[%156, %c0_48], %155 {strides = array<i32>} : memref<64x32xf32, #tpu.memory_space<vmem>>, vector<8x32xf32>,
    %c6_i32 = arith.constant 6 : i32
    %c8_i32_49 = arith.constant 8 : i32
    %158 = arith.muli %c6_i32, %c8_i32_49 : i32
    %159 = tpu.assume_multiple %158, 8 : i32
    %160 = arith.index_cast %159 : i32 to index
    %c0_50 = arith.constant 0 : index
    %161 = vector.load %arg11[%160, %c0_50] : memref<64x128xf32, #tpu.memory_space<vmem>>, vector<8x128xf32>
    %c0_51 = arith.constant 0 : index
    %c0_52 = arith.constant 0 : index
    %162 = vector.load %arg3[%c0_51, %c0_52] : memref<32x128xf32, #tpu.memory_space<vmem>>, vector<32x128xf32>
    %cst_53 = arith.constant dense<0.000000e+00> : vector<8x128xf32>
    %163 = tpu.matmul %155, %162, %cst_53 {dimension_numbers = #tpu.dot_dimension_numbers<[1], [0], [0], [1], [0, 0, 1, 1], [], []>} : vector<8x32xf32>, vector<32x128xf32>, vector<8x128xf32> -> vector<8x128xf32>
    %164 = arith.addf %161, %163 : vector<8x128xf32>
    %165 = vector.extract_strided_slice %164 {offsets = [0, 0], sizes = [8, 96], strides = [1, 1]} : vector<8x128xf32> to vector<8x96xf32>
    %166 = arith.negf %165 : vector<8x96xf32>
    %167 = math.exp %166 : vector<8x96xf32>
    %cst_54 = arith.constant 1.000000e+00 : f32
    %168 = vector.broadcast %cst_54 : f32 to vector<8x96xf32>
    %169 = arith.addf %168, %167 : vector<8x96xf32>
    %170 = arith.divf %168, %169 : vector<8x96xf32>
    %171 = vector.extract_strided_slice %164 {offsets = [0, 96], sizes = [8, 32], strides = [1, 1]} : vector<8x128xf32> to vector<8x32xf32>
    %172 = math.tanh %171 : vector<8x32xf32>
    %173 = vector.extract_strided_slice %170 {offsets = [0, 0], sizes = [8, 32], strides = [1, 1]} : vector<8x96xf32> to vector<8x32xf32>
    %174 = vector.extract_strided_slice %170 {offsets = [0, 32], sizes = [8, 32], strides = [1, 1]} : vector<8x96xf32> to vector<8x32xf32>
    %175 = vector.extract_strided_slice %170 {offsets = [0, 64], sizes = [8, 32], strides = [1, 1]} : vector<8x96xf32> to vector<8x32xf32>
    %176 = arith.mulf %174, %153 : vector<8x32xf32>
    %177 = arith.mulf %173, %172 : vector<8x32xf32>
    %178 = arith.addf %176, %177 : vector<8x32xf32>
    %179 = math.tanh %178 : vector<8x32xf32>
    %180 = arith.mulf %175, %179 : vector<8x32xf32>
    %181 = arith.index_cast %159 : i32 to index
    %c0_55 = arith.constant 0 : index
    %182 = vector.load %arg12[%181, %c0_55] : memref<64x32xf32, #tpu.memory_space<vmem>>, vector<8x32xf32>
    tpu.vector_store %arg12[%181, %c0_55], %180 {strides = array<i32>} : memref<64x32xf32, #tpu.memory_space<vmem>>, vector<8x32xf32>,
    %c7_i32 = arith.constant 7 : i32
    %c8_i32_56 = arith.constant 8 : i32
    %183 = arith.muli %c7_i32, %c8_i32_56 : i32
    %184 = tpu.assume_multiple %183, 8 : i32
    %185 = arith.index_cast %184 : i32 to index
    %c0_57 = arith.constant 0 : index
    %186 = vector.load %arg11[%185, %c0_57] : memref<64x128xf32, #tpu.memory_space<vmem>>, vector<8x128xf32>
    %c0_58 = arith.constant 0 : index
    %c0_59 = arith.constant 0 : index
    %187 = vector.load %arg3[%c0_58, %c0_59] : memref<32x128xf32, #tpu.memory_space<vmem>>, vector<32x128xf32>
    %cst_60 = arith.constant dense<0.000000e+00> : vector<8x128xf32>
    %188 = tpu.matmul %180, %187, %cst_60 {dimension_numbers = #tpu.dot_dimension_numbers<[1], [0], [0], [1], [0, 0, 1, 1], [], []>} : vector<8x32xf32>, vector<32x128xf32>, vector<8x128xf32> -> vector<8x128xf32>
    %189 = arith.addf %186, %188 : vector<8x128xf32>
    %190 = vector.extract_strided_slice %189 {offsets = [0, 0], sizes = [8, 96], strides = [1, 1]} : vector<8x128xf32> to vector<8x96xf32>
    %191 = arith.negf %190 : vector<8x96xf32>
    %192 = math.exp %191 : vector<8x96xf32>
    %cst_61 = arith.constant 1.000000e+00 : f32
    %193 = vector.broadcast %cst_61 : f32 to vector<8x96xf32>
    %194 = arith.addf %193, %192 : vector<8x96xf32>
    %195 = arith.divf %193, %194 : vector<8x96xf32>
    %196 = vector.extract_strided_slice %189 {offsets = [0, 96], sizes = [8, 32], strides = [1, 1]} : vector<8x128xf32> to vector<8x32xf32>
    %197 = math.tanh %196 : vector<8x32xf32>
    %198 = vector.extract_strided_slice %195 {offsets = [0, 0], sizes = [8, 32], strides = [1, 1]} : vector<8x96xf32> to vector<8x32xf32>
    %199 = vector.extract_strided_slice %195 {offsets = [0, 32], sizes = [8, 32], strides = [1, 1]} : vector<8x96xf32> to vector<8x32xf32>
    %200 = vector.extract_strided_slice %195 {offsets = [0, 64], sizes = [8, 32], strides = [1, 1]} : vector<8x96xf32> to vector<8x32xf32>
    %201 = arith.mulf %199, %178 : vector<8x32xf32>
    %202 = arith.mulf %198, %197 : vector<8x32xf32>
    %203 = arith.addf %201, %202 : vector<8x32xf32>
    %204 = math.tanh %203 : vector<8x32xf32>
    %205 = arith.mulf %200, %204 : vector<8x32xf32>
    %206 = arith.index_cast %184 : i32 to index
    %c0_62 = arith.constant 0 : index
    %207 = vector.load %arg12[%206, %c0_62] : memref<64x32xf32, #tpu.memory_space<vmem>>, vector<8x32xf32>
    tpu.vector_store %arg12[%206, %c0_62], %205 {strides = array<i32>} : memref<64x32xf32, #tpu.memory_space<vmem>>, vector<8x32xf32>,
    %c8_i32_63 = arith.constant 8 : i32
    %c0_64 = arith.constant 0 : index
    %c0_65 = arith.constant 0 : index
    %208 = vector.load %arg12[%c0_64, %c0_65] : memref<64x32xf32, #tpu.memory_space<vmem>>, vector<64x32xf32>
    %c0_66 = arith.constant 0 : index
    %c0_67 = arith.constant 0 : index
    %209 = vector.load %arg5[%c0_66, %c0_67] : memref<32x128xf32, #tpu.memory_space<vmem>>, vector<32x128xf32>
    %cst_68 = arith.constant dense<0.000000e+00> : vector<64x128xf32>
    %210 = tpu.matmul %208, %209, %cst_68 {dimension_numbers = #tpu.dot_dimension_numbers<[1], [0], [0], [1], [0, 0, 1, 1], [], []>} : vector<64x32xf32>, vector<32x128xf32>, vector<64x128xf32> -> vector<64x128xf32>
    %c0_69 = arith.constant 0 : index
    %c0_70 = arith.constant 0 : index
    %211 = vector.load %arg7[%c0_69, %c0_70] : memref<1x128xf32, #tpu.memory_space<vmem>>, vector<1x128xf32>
    %212 = vector.broadcast %211 : vector<1x128xf32> to vector<64x128xf32>
    %213 = arith.addf %210, %212 : vector<64x128xf32>
    %c0_71 = arith.constant 0 : index
    %c0_72 = arith.constant 0 : index
    %214 = vector.load %arg13[%c0_71, %c0_72] : memref<64x128xf32, #tpu.memory_space<vmem>>, vector<64x128xf32>
    tpu.vector_store %arg13[%c0_71, %c0_72], %213 {strides = array<i32>} : memref<64x128xf32, #tpu.memory_space<vmem>>, vector<64x128xf32>,
    %c0_i32_73 = arith.constant 0 : i32
    %c8_i32_74 = arith.constant 8 : i32
    %215 = arith.muli %c0_i32_73, %c8_i32_74 : i32
    %216 = tpu.assume_multiple %215, 8 : i32
    %217 = arith.index_cast %216 : i32 to index
    %c0_75 = arith.constant 0 : index
    %218 = vector.load %arg13[%217, %c0_75] : memref<64x128xf32, #tpu.memory_space<vmem>>, vector<8x128xf32>
    %c0_76 = arith.constant 0 : index
    %c0_77 = arith.constant 0 : index
    %219 = vector.load %arg6[%c0_76, %c0_77] : memref<32x128xf32, #tpu.memory_space<vmem>>, vector<32x128xf32>
    %cst_78 = arith.constant dense<0.000000e+00> : vector<8x128xf32>
    %220 = tpu.matmul %7, %219, %cst_78 {dimension_numbers = #tpu.dot_dimension_numbers<[1], [0], [0], [1], [0, 0, 1, 1], [], []>} : vector<8x32xf32>, vector<32x128xf32>, vector<8x128xf32> -> vector<8x128xf32>
    %221 = arith.addf %218, %220 : vector<8x128xf32>
    %222 = vector.extract_strided_slice %221 {offsets = [0, 0], sizes = [8, 96], strides = [1, 1]} : vector<8x128xf32> to vector<8x96xf32>
    %223 = arith.negf %222 : vector<8x96xf32>
    %224 = math.exp %223 : vector<8x96xf32>
    %cst_79 = arith.constant 1.000000e+00 : f32
    %225 = vector.broadcast %cst_79 : f32 to vector<8x96xf32>
    %226 = arith.addf %225, %224 : vector<8x96xf32>
    %227 = arith.divf %225, %226 : vector<8x96xf32>
    %228 = vector.extract_strided_slice %221 {offsets = [0, 96], sizes = [8, 32], strides = [1, 1]} : vector<8x128xf32> to vector<8x32xf32>
    %229 = math.tanh %228 : vector<8x32xf32>
    %230 = vector.extract_strided_slice %227 {offsets = [0, 0], sizes = [8, 32], strides = [1, 1]} : vector<8x96xf32> to vector<8x32xf32>
    %231 = vector.extract_strided_slice %227 {offsets = [0, 32], sizes = [8, 32], strides = [1, 1]} : vector<8x96xf32> to vector<8x32xf32>
    %232 = vector.extract_strided_slice %227 {offsets = [0, 64], sizes = [8, 32], strides = [1, 1]} : vector<8x96xf32> to vector<8x32xf32>
    %233 = arith.mulf %231, %7 : vector<8x32xf32>
    %234 = arith.mulf %230, %229 : vector<8x32xf32>
    %235 = arith.addf %233, %234 : vector<8x32xf32>
    %236 = math.tanh %235 : vector<8x32xf32>
    %237 = arith.mulf %232, %236 : vector<8x32xf32>
    %c1_i32_80 = arith.constant 1 : i32
    %c8_i32_81 = arith.constant 8 : i32
    %238 = arith.muli %c1_i32_80, %c8_i32_81 : i32
    %239 = tpu.assume_multiple %238, 8 : i32
    %240 = arith.index_cast %239 : i32 to index
    %c0_82 = arith.constant 0 : index
    %241 = vector.load %arg13[%240, %c0_82] : memref<64x128xf32, #tpu.memory_space<vmem>>, vector<8x128xf32>
    %c0_83 = arith.constant 0 : index
    %c0_84 = arith.constant 0 : index
    %242 = vector.load %arg6[%c0_83, %c0_84] : memref<32x128xf32, #tpu.memory_space<vmem>>, vector<32x128xf32>
    %cst_85 = arith.constant dense<0.000000e+00> : vector<8x128xf32>
    %243 = tpu.matmul %237, %242, %cst_85 {dimension_numbers = #tpu.dot_dimension_numbers<[1], [0], [0], [1], [0, 0, 1, 1], [], []>} : vector<8x32xf32>, vector<32x128xf32>, vector<8x128xf32> -> vector<8x128xf32>
    %244 = arith.addf %241, %243 : vector<8x128xf32>
    %245 = vector.extract_strided_slice %244 {offsets = [0, 0], sizes = [8, 96], strides = [1, 1]} : vector<8x128xf32> to vector<8x96xf32>
    %246 = arith.negf %245 : vector<8x96xf32>
    %247 = math.exp %246 : vector<8x96xf32>
    %cst_86 = arith.constant 1.000000e+00 : f32
    %248 = vector.broadcast %cst_86 : f32 to vector<8x96xf32>
    %249 = arith.addf %248, %247 : vector<8x96xf32>
    %250 = arith.divf %248, %249 : vector<8x96xf32>
    %251 = vector.extract_strided_slice %244 {offsets = [0, 96], sizes = [8, 32], strides = [1, 1]} : vector<8x128xf32> to vector<8x32xf32>
    %252 = math.tanh %251 : vector<8x32xf32>
    %253 = vector.extract_strided_slice %250 {offsets = [0, 0], sizes = [8, 32], strides = [1, 1]} : vector<8x96xf32> to vector<8x32xf32>
    %254 = vector.extract_strided_slice %250 {offsets = [0, 32], sizes = [8, 32], strides = [1, 1]} : vector<8x96xf32> to vector<8x32xf32>
    %255 = vector.extract_strided_slice %250 {offsets = [0, 64], sizes = [8, 32], strides = [1, 1]} : vector<8x96xf32> to vector<8x32xf32>
    %256 = arith.mulf %254, %235 : vector<8x32xf32>
    %257 = arith.mulf %253, %252 : vector<8x32xf32>
    %258 = arith.addf %256, %257 : vector<8x32xf32>
    %259 = math.tanh %258 : vector<8x32xf32>
    %260 = arith.mulf %255, %259 : vector<8x32xf32>
    %c2_i32_87 = arith.constant 2 : i32
    %c8_i32_88 = arith.constant 8 : i32
    %261 = arith.muli %c2_i32_87, %c8_i32_88 : i32
    %262 = tpu.assume_multiple %261, 8 : i32
    %263 = arith.index_cast %262 : i32 to index
    %c0_89 = arith.constant 0 : index
    %264 = vector.load %arg13[%263, %c0_89] : memref<64x128xf32, #tpu.memory_space<vmem>>, vector<8x128xf32>
    %c0_90 = arith.constant 0 : index
    %c0_91 = arith.constant 0 : index
    %265 = vector.load %arg6[%c0_90, %c0_91] : memref<32x128xf32, #tpu.memory_space<vmem>>, vector<32x128xf32>
    %cst_92 = arith.constant dense<0.000000e+00> : vector<8x128xf32>
    %266 = tpu.matmul %260, %265, %cst_92 {dimension_numbers = #tpu.dot_dimension_numbers<[1], [0], [0], [1], [0, 0, 1, 1], [], []>} : vector<8x32xf32>, vector<32x128xf32>, vector<8x128xf32> -> vector<8x128xf32>
    %267 = arith.addf %264, %266 : vector<8x128xf32>
    %268 = vector.extract_strided_slice %267 {offsets = [0, 0], sizes = [8, 96], strides = [1, 1]} : vector<8x128xf32> to vector<8x96xf32>
    %269 = arith.negf %268 : vector<8x96xf32>
    %270 = math.exp %269 : vector<8x96xf32>
    %cst_93 = arith.constant 1.000000e+00 : f32
    %271 = vector.broadcast %cst_93 : f32 to vector<8x96xf32>
    %272 = arith.addf %271, %270 : vector<8x96xf32>
    %273 = arith.divf %271, %272 : vector<8x96xf32>
    %274 = vector.extract_strided_slice %267 {offsets = [0, 96], sizes = [8, 32], strides = [1, 1]} : vector<8x128xf32> to vector<8x32xf32>
    %275 = math.tanh %274 : vector<8x32xf32>
    %276 = vector.extract_strided_slice %273 {offsets = [0, 0], sizes = [8, 32], strides = [1, 1]} : vector<8x96xf32> to vector<8x32xf32>
    %277 = vector.extract_strided_slice %273 {offsets = [0, 32], sizes = [8, 32], strides = [1, 1]} : vector<8x96xf32> to vector<8x32xf32>
    %278 = vector.extract_strided_slice %273 {offsets = [0, 64], sizes = [8, 32], strides = [1, 1]} : vector<8x96xf32> to vector<8x32xf32>
    %279 = arith.mulf %277, %258 : vector<8x32xf32>
    %280 = arith.mulf %276, %275 : vector<8x32xf32>
    %281 = arith.addf %279, %280 : vector<8x32xf32>
    %282 = math.tanh %281 : vector<8x32xf32>
    %283 = arith.mulf %278, %282 : vector<8x32xf32>
    %c3_i32_94 = arith.constant 3 : i32
    %c8_i32_95 = arith.constant 8 : i32
    %284 = arith.muli %c3_i32_94, %c8_i32_95 : i32
    %285 = tpu.assume_multiple %284, 8 : i32
    %286 = arith.index_cast %285 : i32 to index
    %c0_96 = arith.constant 0 : index
    %287 = vector.load %arg13[%286, %c0_96] : memref<64x128xf32, #tpu.memory_space<vmem>>, vector<8x128xf32>
    %c0_97 = arith.constant 0 : index
    %c0_98 = arith.constant 0 : index
    %288 = vector.load %arg6[%c0_97, %c0_98] : memref<32x128xf32, #tpu.memory_space<vmem>>, vector<32x128xf32>
    %cst_99 = arith.constant dense<0.000000e+00> : vector<8x128xf32>
    %289 = tpu.matmul %283, %288, %cst_99 {dimension_numbers = #tpu.dot_dimension_numbers<[1], [0], [0], [1], [0, 0, 1, 1], [], []>} : vector<8x32xf32>, vector<32x128xf32>, vector<8x128xf32> -> vector<8x128xf32>
    %290 = arith.addf %287, %289 : vector<8x128xf32>
    %291 = vector.extract_strided_slice %290 {offsets = [0, 0], sizes = [8, 96], strides = [1, 1]} : vector<8x128xf32> to vector<8x96xf32>
    %292 = arith.negf %291 : vector<8x96xf32>
    %293 = math.exp %292 : vector<8x96xf32>
    %cst_100 = arith.constant 1.000000e+00 : f32
    %294 = vector.broadcast %cst_100 : f32 to vector<8x96xf32>
    %295 = arith.addf %294, %293 : vector<8x96xf32>
    %296 = arith.divf %294, %295 : vector<8x96xf32>
    %297 = vector.extract_strided_slice %290 {offsets = [0, 96], sizes = [8, 32], strides = [1, 1]} : vector<8x128xf32> to vector<8x32xf32>
    %298 = math.tanh %297 : vector<8x32xf32>
    %299 = vector.extract_strided_slice %296 {offsets = [0, 0], sizes = [8, 32], strides = [1, 1]} : vector<8x96xf32> to vector<8x32xf32>
    %300 = vector.extract_strided_slice %296 {offsets = [0, 32], sizes = [8, 32], strides = [1, 1]} : vector<8x96xf32> to vector<8x32xf32>
    %301 = vector.extract_strided_slice %296 {offsets = [0, 64], sizes = [8, 32], strides = [1, 1]} : vector<8x96xf32> to vector<8x32xf32>
    %302 = arith.mulf %300, %281 : vector<8x32xf32>
    %303 = arith.mulf %299, %298 : vector<8x32xf32>
    %304 = arith.addf %302, %303 : vector<8x32xf32>
    %305 = math.tanh %304 : vector<8x32xf32>
    %306 = arith.mulf %301, %305 : vector<8x32xf32>
    %c4_i32_101 = arith.constant 4 : i32
    %c8_i32_102 = arith.constant 8 : i32
    %307 = arith.muli %c4_i32_101, %c8_i32_102 : i32
    %308 = tpu.assume_multiple %307, 8 : i32
    %309 = arith.index_cast %308 : i32 to index
    %c0_103 = arith.constant 0 : index
    %310 = vector.load %arg13[%309, %c0_103] : memref<64x128xf32, #tpu.memory_space<vmem>>, vector<8x128xf32>
    %c0_104 = arith.constant 0 : index
    %c0_105 = arith.constant 0 : index
    %311 = vector.load %arg6[%c0_104, %c0_105] : memref<32x128xf32, #tpu.memory_space<vmem>>, vector<32x128xf32>
    %cst_106 = arith.constant dense<0.000000e+00> : vector<8x128xf32>
    %312 = tpu.matmul %306, %311, %cst_106 {dimension_numbers = #tpu.dot_dimension_numbers<[1], [0], [0], [1], [0, 0, 1, 1], [], []>} : vector<8x32xf32>, vector<32x128xf32>, vector<8x128xf32> -> vector<8x128xf32>
    %313 = arith.addf %310, %312 : vector<8x128xf32>
    %314 = vector.extract_strided_slice %313 {offsets = [0, 0], sizes = [8, 96], strides = [1, 1]} : vector<8x128xf32> to vector<8x96xf32>
    %315 = arith.negf %314 : vector<8x96xf32>
    %316 = math.exp %315 : vector<8x96xf32>
    %cst_107 = arith.constant 1.000000e+00 : f32
    %317 = vector.broadcast %cst_107 : f32 to vector<8x96xf32>
    %318 = arith.addf %317, %316 : vector<8x96xf32>
    %319 = arith.divf %317, %318 : vector<8x96xf32>
    %320 = vector.extract_strided_slice %313 {offsets = [0, 96], sizes = [8, 32], strides = [1, 1]} : vector<8x128xf32> to vector<8x32xf32>
    %321 = math.tanh %320 : vector<8x32xf32>
    %322 = vector.extract_strided_slice %319 {offsets = [0, 0], sizes = [8, 32], strides = [1, 1]} : vector<8x96xf32> to vector<8x32xf32>
    %323 = vector.extract_strided_slice %319 {offsets = [0, 32], sizes = [8, 32], strides = [1, 1]} : vector<8x96xf32> to vector<8x32xf32>
    %324 = vector.extract_strided_slice %319 {offsets = [0, 64], sizes = [8, 32], strides = [1, 1]} : vector<8x96xf32> to vector<8x32xf32>
    %325 = arith.mulf %323, %304 : vector<8x32xf32>
    %326 = arith.mulf %322, %321 : vector<8x32xf32>
    %327 = arith.addf %325, %326 : vector<8x32xf32>
    %328 = math.tanh %327 : vector<8x32xf32>
    %329 = arith.mulf %324, %328 : vector<8x32xf32>
    %c5_i32_108 = arith.constant 5 : i32
    %c8_i32_109 = arith.constant 8 : i32
    %330 = arith.muli %c5_i32_108, %c8_i32_109 : i32
    %331 = tpu.assume_multiple %330, 8 : i32
    %332 = arith.index_cast %331 : i32 to index
    %c0_110 = arith.constant 0 : index
    %333 = vector.load %arg13[%332, %c0_110] : memref<64x128xf32, #tpu.memory_space<vmem>>, vector<8x128xf32>
    %c0_111 = arith.constant 0 : index
    %c0_112 = arith.constant 0 : index
    %334 = vector.load %arg6[%c0_111, %c0_112] : memref<32x128xf32, #tpu.memory_space<vmem>>, vector<32x128xf32>
    %cst_113 = arith.constant dense<0.000000e+00> : vector<8x128xf32>
    %335 = tpu.matmul %329, %334, %cst_113 {dimension_numbers = #tpu.dot_dimension_numbers<[1], [0], [0], [1], [0, 0, 1, 1], [], []>} : vector<8x32xf32>, vector<32x128xf32>, vector<8x128xf32> -> vector<8x128xf32>
    %336 = arith.addf %333, %335 : vector<8x128xf32>
    %337 = vector.extract_strided_slice %336 {offsets = [0, 0], sizes = [8, 96], strides = [1, 1]} : vector<8x128xf32> to vector<8x96xf32>
    %338 = arith.negf %337 : vector<8x96xf32>
    %339 = math.exp %338 : vector<8x96xf32>
    %cst_114 = arith.constant 1.000000e+00 : f32
    %340 = vector.broadcast %cst_114 : f32 to vector<8x96xf32>
    %341 = arith.addf %340, %339 : vector<8x96xf32>
    %342 = arith.divf %340, %341 : vector<8x96xf32>
    %343 = vector.extract_strided_slice %336 {offsets = [0, 96], sizes = [8, 32], strides = [1, 1]} : vector<8x128xf32> to vector<8x32xf32>
    %344 = math.tanh %343 : vector<8x32xf32>
    %345 = vector.extract_strided_slice %342 {offsets = [0, 0], sizes = [8, 32], strides = [1, 1]} : vector<8x96xf32> to vector<8x32xf32>
    %346 = vector.extract_strided_slice %342 {offsets = [0, 32], sizes = [8, 32], strides = [1, 1]} : vector<8x96xf32> to vector<8x32xf32>
    %347 = vector.extract_strided_slice %342 {offsets = [0, 64], sizes = [8, 32], strides = [1, 1]} : vector<8x96xf32> to vector<8x32xf32>
    %348 = arith.mulf %346, %327 : vector<8x32xf32>
    %349 = arith.mulf %345, %344 : vector<8x32xf32>
    %350 = arith.addf %348, %349 : vector<8x32xf32>
    %351 = math.tanh %350 : vector<8x32xf32>
    %352 = arith.mulf %347, %351 : vector<8x32xf32>
    %c6_i32_115 = arith.constant 6 : i32
    %c8_i32_116 = arith.constant 8 : i32
    %353 = arith.muli %c6_i32_115, %c8_i32_116 : i32
    %354 = tpu.assume_multiple %353, 8 : i32
    %355 = arith.index_cast %354 : i32 to index
    %c0_117 = arith.constant 0 : index
    %356 = vector.load %arg13[%355, %c0_117] : memref<64x128xf32, #tpu.memory_space<vmem>>, vector<8x128xf32>
    %c0_118 = arith.constant 0 : index
    %c0_119 = arith.constant 0 : index
    %357 = vector.load %arg6[%c0_118, %c0_119] : memref<32x128xf32, #tpu.memory_space<vmem>>, vector<32x128xf32>
    %cst_120 = arith.constant dense<0.000000e+00> : vector<8x128xf32>
    %358 = tpu.matmul %352, %357, %cst_120 {dimension_numbers = #tpu.dot_dimension_numbers<[1], [0], [0], [1], [0, 0, 1, 1], [], []>} : vector<8x32xf32>, vector<32x128xf32>, vector<8x128xf32> -> vector<8x128xf32>
    %359 = arith.addf %356, %358 : vector<8x128xf32>
    %360 = vector.extract_strided_slice %359 {offsets = [0, 0], sizes = [8, 96], strides = [1, 1]} : vector<8x128xf32> to vector<8x96xf32>
    %361 = arith.negf %360 : vector<8x96xf32>
    %362 = math.exp %361 : vector<8x96xf32>
    %cst_121 = arith.constant 1.000000e+00 : f32
    %363 = vector.broadcast %cst_121 : f32 to vector<8x96xf32>
    %364 = arith.addf %363, %362 : vector<8x96xf32>
    %365 = arith.divf %363, %364 : vector<8x96xf32>
    %366 = vector.extract_strided_slice %359 {offsets = [0, 96], sizes = [8, 32], strides = [1, 1]} : vector<8x128xf32> to vector<8x32xf32>
    %367 = math.tanh %366 : vector<8x32xf32>
    %368 = vector.extract_strided_slice %365 {offsets = [0, 0], sizes = [8, 32], strides = [1, 1]} : vector<8x96xf32> to vector<8x32xf32>
    %369 = vector.extract_strided_slice %365 {offsets = [0, 32], sizes = [8, 32], strides = [1, 1]} : vector<8x96xf32> to vector<8x32xf32>
    %370 = vector.extract_strided_slice %365 {offsets = [0, 64], sizes = [8, 32], strides = [1, 1]} : vector<8x96xf32> to vector<8x32xf32>
    %371 = arith.mulf %369, %350 : vector<8x32xf32>
    %372 = arith.mulf %368, %367 : vector<8x32xf32>
    %373 = arith.addf %371, %372 : vector<8x32xf32>
    %374 = math.tanh %373 : vector<8x32xf32>
    %375 = arith.mulf %370, %374 : vector<8x32xf32>
    %c7_i32_122 = arith.constant 7 : i32
    %c8_i32_123 = arith.constant 8 : i32
    %376 = arith.muli %c7_i32_122, %c8_i32_123 : i32
    %377 = tpu.assume_multiple %376, 8 : i32
    %378 = arith.index_cast %377 : i32 to index
    %c0_124 = arith.constant 0 : index
    %379 = vector.load %arg13[%378, %c0_124] : memref<64x128xf32, #tpu.memory_space<vmem>>, vector<8x128xf32>
    %c0_125 = arith.constant 0 : index
    %c0_126 = arith.constant 0 : index
    %380 = vector.load %arg6[%c0_125, %c0_126] : memref<32x128xf32, #tpu.memory_space<vmem>>, vector<32x128xf32>
    %cst_127 = arith.constant dense<0.000000e+00> : vector<8x128xf32>
    %381 = tpu.matmul %375, %380, %cst_127 {dimension_numbers = #tpu.dot_dimension_numbers<[1], [0], [0], [1], [0, 0, 1, 1], [], []>} : vector<8x32xf32>, vector<32x128xf32>, vector<8x128xf32> -> vector<8x128xf32>
    %382 = arith.addf %379, %381 : vector<8x128xf32>
    %383 = vector.extract_strided_slice %382 {offsets = [0, 0], sizes = [8, 96], strides = [1, 1]} : vector<8x128xf32> to vector<8x96xf32>
    %384 = arith.negf %383 : vector<8x96xf32>
    %385 = math.exp %384 : vector<8x96xf32>
    %cst_128 = arith.constant 1.000000e+00 : f32
    %386 = vector.broadcast %cst_128 : f32 to vector<8x96xf32>
    %387 = arith.addf %386, %385 : vector<8x96xf32>
    %388 = arith.divf %386, %387 : vector<8x96xf32>
    %389 = vector.extract_strided_slice %382 {offsets = [0, 96], sizes = [8, 32], strides = [1, 1]} : vector<8x128xf32> to vector<8x32xf32>
    %390 = math.tanh %389 : vector<8x32xf32>
    %391 = vector.extract_strided_slice %388 {offsets = [0, 0], sizes = [8, 32], strides = [1, 1]} : vector<8x96xf32> to vector<8x32xf32>
    %392 = vector.extract_strided_slice %388 {offsets = [0, 32], sizes = [8, 32], strides = [1, 1]} : vector<8x96xf32> to vector<8x32xf32>
    %393 = vector.extract_strided_slice %388 {offsets = [0, 64], sizes = [8, 32], strides = [1, 1]} : vector<8x96xf32> to vector<8x32xf32>
    %394 = arith.mulf %392, %373 : vector<8x32xf32>
    %395 = arith.mulf %391, %390 : vector<8x32xf32>
    %396 = arith.addf %394, %395 : vector<8x32xf32>
    %397 = math.tanh %396 : vector<8x32xf32>
    %398 = arith.mulf %393, %397 : vector<8x32xf32>
    %c8_i32_129 = arith.constant 8 : i32
    %c0_130 = arith.constant 0 : index
    %c0_131 = arith.constant 0 : index
    %399 = vector.load %arg8[%c0_130, %c0_131] : memref<32x10xf32, #tpu.memory_space<vmem>>, vector<32x10xf32>
    %cst_132 = arith.constant dense<0.000000e+00> : vector<8x10xf32>
    %400 = tpu.matmul %398, %399, %cst_132 {dimension_numbers = #tpu.dot_dimension_numbers<[1], [0], [0], [1], [0, 0, 1, 1], [], []>} : vector<8x32xf32>, vector<32x10xf32>, vector<8x10xf32> -> vector<8x10xf32>
    %c0_133 = arith.constant 0 : index
    %c0_134 = arith.constant 0 : index
    %401 = vector.load %arg9[%c0_133, %c0_134] : memref<1x10xf32, #tpu.memory_space<vmem>>, vector<1x10xf32>
    %402 = vector.broadcast %401 : vector<1x10xf32> to vector<8x10xf32>
    %403 = arith.addf %400, %402 : vector<8x10xf32>
    %cst_135 = arith.constant dense<0xFF800000> : vector<8xf32>
    %404 = vector.multi_reduction <maximumf>, %403, %cst_135 [1] : vector<8x10xf32> to vector<8xf32>
    %405 = vector.shape_cast %404 : vector<8xf32> to vector<8x1xf32>
    %406 = vector.broadcast %405 : vector<8x1xf32> to vector<8x10xf32>
    %407 = arith.subf %403, %406 : vector<8x10xf32>
    %408 = math.exp %407 : vector<8x10xf32>
    %cst_136 = arith.constant dense<0.000000e+00> : vector<8xf32>
    %409 = vector.multi_reduction <add>, %408, %cst_136 [1] : vector<8x10xf32> to vector<8xf32>
    %410 = vector.shape_cast %409 : vector<8xf32> to vector<8x1xf32>
    %411 = math.log %410 : vector<8x1xf32>
    %412 = vector.broadcast %411 : vector<8x1xf32> to vector<8x10xf32>
    %413 = arith.subf %407, %412 : vector<8x10xf32>
    %c0_137 = arith.constant 0 : index
    %c0_138 = arith.constant 0 : index
    %414 = vector.load %arg10[%c0_137, %c0_138] : memref<8x10xf32, #tpu.memory_space<vmem>>, vector<8x10xf32>
    tpu.vector_store %arg10[%c0_137, %c0_138], %413 {strides = array<i32>} : memref<8x10xf32, #tpu.memory_space<vmem>>, vector<8x10xf32>,
    return
  }
  func.func @transform_0(%arg0: i32) -> (i32, i32) {
    %c0_i32 = arith.constant 0 : i32
    %c0_i32_0 = arith.constant 0 : i32
    %c0_i32_1 = arith.constant 0 : i32
    return %c0_i32, %c0_i32_0 : i32, i32
  }
  func.func @transform_1(%arg0: i32) -> (i32, i32) {
    %c0_i32 = arith.constant 0 : i32
    %c0_i32_0 = arith.constant 0 : i32
    %c0_i32_1 = arith.constant 0 : i32
    return %c0_i32, %c0_i32_0 : i32, i32
  }
  func.func @transform_2(%arg0: i32) -> (i32, i32) {
    %c0_i32 = arith.constant 0 : i32
    %c0_i32_0 = arith.constant 0 : i32
    %c0_i32_1 = arith.constant 0 : i32
    return %c0_i32, %c0_i32_0 : i32, i32
  }
  func.func @transform_3(%arg0: i32) -> (i32, i32) {
    %c0_i32 = arith.constant 0 : i32
    %c0_i32_0 = arith.constant 0 : i32
    %c0_i32_1 = arith.constant 0 : i32
    return %c0_i32, %c0_i32_0 : i32, i32
  }
  func.func @transform_4(%arg0: i32) -> (i32, i32) {
    %c0_i32 = arith.constant 0 : i32
    %c0_i32_0 = arith.constant 0 : i32
    %c0_i32_1 = arith.constant 0 : i32
    return %c0_i32, %c0_i32_0 : i32, i32
  }
  func.func @transform_5(%arg0: i32) -> (i32, i32) {
    %c0_i32 = arith.constant 0 : i32
    %c0_i32_0 = arith.constant 0 : i32
    %c0_i32_1 = arith.constant 0 : i32
    return %c0_i32, %c0_i32_0 : i32, i32
  }
  func.func @transform_6(%arg0: i32) -> (i32, i32) {
    %c0_i32 = arith.constant 0 : i32
    %c0_i32_0 = arith.constant 0 : i32
    %c0_i32_1 = arith.constant 0 : i32
    return %c0_i32, %c0_i32_0 : i32, i32
  }
  func.func @transform_7(%arg0: i32) -> (i32, i32) {
    %c0_i32 = arith.constant 0 : i32
    %c0_i32_0 = arith.constant 0 : i32
    %c0_i32_1 = arith.constant 0 : i32
    return %c0_i32, %c0_i32_0 : i32, i32
  }
  func.func @transform_8(%arg0: i32) -> (i32, i32) {
    %c0_i32 = arith.constant 0 : i32
    %c0_i32_0 = arith.constant 0 : i32
    %c0_i32_1 = arith.constant 0 : i32
    return %c0_i32, %c0_i32_0 : i32, i32
  }
  func.func @transform_9(%arg0: i32) -> (i32, i32) {
    %c0_i32 = arith.constant 0 : i32
    %c0_i32_0 = arith.constant 0 : i32
    %c0_i32_1 = arith.constant 0 : i32
    return %c0_i32, %c0_i32_0 : i32, i32
  }
}

</mosaic_0001>

<llo_original>
// kernel: lstmnet_forward_fn.1
$region0: #{lstmnet_forward_fn.1}
  #allocation0 [shape = 'u32[]', space=smem, size = 0x4, offset = 0x4, fixed_abs, tag = 'smem constant byte address 0x4 - core index']
  #allocation1 [shape = 'u32[144,128]{1,0:T(1,128)}', space=vmem, size = 0x12000, scoped, tag = 'internal scratch']
  #allocation2 [shape = 'f32[64,128]{1,0:T(8,128)}', space=vmem, size = 0x8000, scoped, tag = 'scratch operand']
  #allocation3 [shape = 'f32[64,32]{1,0:T(8,128)}', space=vmem, size = 0x8000, scoped, tag = 'scratch operand']
  #allocation4 [shape = 'f32[64,128]{1,0:T(8,128)}', space=vmem, size = 0x8000, scoped, tag = 'scratch operand']
  %s0 = inlined_call_operand.vmem [shape: f32[64,4], index: 0, kind: input, shape index: {}]
  %s1 = inlined_call_operand.vmem [shape: f32[4,128], index: 1, kind: input, shape index: {}]
  %s2 = inlined_call_operand.vmem [shape: f32[32,128], index: 2, kind: input, shape index: {}]
  %s3 = inlined_call_operand.vmem [shape: f32[1,128], index: 3, kind: input, shape index: {}]
  %s4 = inlined_call_operand.vmem [shape: f32[32,128], index: 4, kind: input, shape index: {}]
  %s5 = inlined_call_operand.vmem [shape: f32[32,128], index: 5, kind: input, shape index: {}]
  %s6 = inlined_call_operand.vmem [shape: f32[1,128], index: 6, kind: input, shape index: {}]
  %s7 = inlined_call_operand.vmem [shape: f32[32,10], index: 7, kind: input, shape index: {}]
  %s8 = inlined_call_operand.vmem [shape: f32[1,10], index: 8, kind: input, shape index: {}]
  %s9 = inlined_call_operand.vmem [shape: f32[8,10], index: 9, kind: output, shape index: {}]
  %s10 = sld [smem:[#allocation0]]
  $region46: #{lstmnet_forward_fn.1} parent=0
    _
  %s12 = ssub.s32 1, %s10
  %s13 = scalar_select 0, %s12, %s10
  // Predicated region
  $region2: #{lstmnet_forward_fn.1} parent=0 // pred_check
    _
  $region3: #{lstmnet_forward_fn.1} parent=0 // pred_check_branch
    %15 = sbr.rel (0) target = $region5
  $region4: #{lstmnet_forward_fn.1} parent=0 // pred_region
    _
  $region5: #{lstmnet_forward_fn.1} parent=0 // pred_fallthru
    _
  // Predicated region
  $region6: #{lstmnet_forward_fn.1} parent=0 // pred_check
    _
  $region7: #{lstmnet_forward_fn.1} parent=0 // pred_check_branch
    %17 = sbr.rel (0) target = $region9
  $region8: #{lstmnet_forward_fn.1} parent=0 // pred_region
    _
  $region9: #{lstmnet_forward_fn.1} parent=0 // pred_fallthru
    _
  // Predicated region
  $region10: #{lstmnet_forward_fn.1} parent=0 // pred_check
    _
  $region11: #{lstmnet_forward_fn.1} parent=0 // pred_check_branch
    %19 = sbr.rel (0) target = $region13
  $region12: #{lstmnet_forward_fn.1} parent=0 // pred_region
    _
  $region13: #{lstmnet_forward_fn.1} parent=0 // pred_fallthru
    _
  // Predicated region
  $region14: #{lstmnet_forward_fn.1} parent=0 // pred_check
    _
  $region15: #{lstmnet_forward_fn.1} parent=0 // pred_check_branch
    %21 = sbr.rel (0) target = $region17
  $region16: #{lstmnet_forward_fn.1} parent=0 // pred_region
    _
  $region17: #{lstmnet_forward_fn.1} parent=0 // pred_fallthru
    _
  // Predicated region
  $region18: #{lstmnet_forward_fn.1} parent=0 // pred_check
    _
  $region19: #{lstmnet_forward_fn.1} parent=0 // pred_check_branch
    %23 = sbr.rel (0) target = $region21
  $region20: #{lstmnet_forward_fn.1} parent=0 // pred_region
    _
  $region21: #{lstmnet_forward_fn.1} parent=0 // pred_fallthru
    _
  // Predicated region
  $region22: #{lstmnet_forward_fn.1} parent=0 // pred_check
    _
  $region23: #{lstmnet_forward_fn.1} parent=0 // pred_check_branch
    %25 = sbr.rel (0) target = $region25
  $region24: #{lstmnet_forward_fn.1} parent=0 // pred_region
    _
  $region25: #{lstmnet_forward_fn.1} parent=0 // pred_fallthru
    _
  // Predicated region
  $region26: #{lstmnet_forward_fn.1} parent=0 // pred_check
    _
  $region27: #{lstmnet_forward_fn.1} parent=0 // pred_check_branch
    %27 = sbr.rel (0) target = $region29
  $region28: #{lstmnet_forward_fn.1} parent=0 // pred_region
    _
  $region29: #{lstmnet_forward_fn.1} parent=0 // pred_fallthru
    _
  // Predicated region
  $region30: #{lstmnet_forward_fn.1} parent=0 // pred_check
    _
  $region31: #{lstmnet_forward_fn.1} parent=0 // pred_check_branch
    %29 = sbr.rel (0) target = $region33
  $region32: #{lstmnet_forward_fn.1} parent=0 // pred_region
    _
  $region33: #{lstmnet_forward_fn.1} parent=0 // pred_fallthru
    _
  // Predicated region
  $region34: #{lstmnet_forward_fn.1} parent=0 // pred_check
    _
  $region35: #{lstmnet_forward_fn.1} parent=0 // pred_check_branch
    %31 = sbr.rel (0) target = $region37
  $region36: #{lstmnet_forward_fn.1} parent=0 // pred_region
    _
  $region37: #{lstmnet_forward_fn.1} parent=0 // pred_fallthru
    _
  %v32 = vld [vmem:[%s0] sm:$0xff]
  %v33 = vld [vmem:[%s0 + $0x8] sm:$0xff]
  %v34 = vld [vmem:[%s0 + $0x10] sm:$0xff]
  %v35 = vld [vmem:[%s0 + $0x18] sm:$0xff]
  %v36 = vld [vmem:[%s0 + $0x20] sm:$0xff]
  %v37 = vld [vmem:[%s0 + $0x28] sm:$0xff]
  %v38 = vld [vmem:[%s0 + $0x30] sm:$0xff]
  %v39 = vld [vmem:[%s0 + $0x38] sm:$0xff]
  %v40 = vld [vmem:[%s1] sm:$0xf]
  %v41 = vld [vmem:[%s3] sm:$0x1]
  %v43 = vlaneseq
  %v44 = vshrl.u32 %v43, 7
  %v45 = vsub.s32 0, %v44
  %v46 = vrot.slane %v41, %v45
  %vm48 = vcmask 31744
  %v50 = vsel %vm48, %v32, 0
  %v53 = vsel %vm48, %v33, 0
  %v56 = vsel %vm48, %v34, 0
  %v59 = vsel %vm48, %v35, 0
  %v62 = vsel %vm48, %v36, 0
  %v65 = vsel %vm48, %v37, 0
  %v68 = vsel %vm48, %v38, 0
  %v71 = vsel %vm48, %v39, 0
  %vm73 = vcmask 1043456
  %v75 = vsel %vm73, %v40, 0
  %77 = vmatprep.subr.mxu0 0.0
  %78 = vmatpush1.msra.mxu0 0.0
  %79 = vmatprep.subr.mxu0 0.0
  %80 = vmatpush1.msra.mxu0 0.0
  %81 = vmatprep.subr.mxu0 0.0
  %82 = vmatpush1.msra.mxu0 0.0
  %83 = vmatprep.subr.mxu0 0.0
  %84 = vmatpush1.msra.mxu0 0.0
  %85 = vmatprep.subr.mxu0 0.0
  %86 = vmatpush1.msra.mxu0 0.0
  %87 = vmatprep.subr.mxu0 0.0
  %88 = vmatpush1.msra.mxu0 0.0
  %89 = vmatprep.subr.mxu0 0.0
  %90 = vmatpush1.msra.mxu0 0.0
  %91 = vmatprep.subr.mxu0 0.0
  %92 = vmatpush1.msra.mxu0 0.0
  %93 = vmatprep.subr.mxu0 0.0
  %94 = vmatpush1.msra.mxu0 0.0
  %95 = vmatprep.subr.mxu0 0.0
  %96 = vmatpush1.msra.mxu0 0.0
  %97 = vmatprep.subr.mxu0 0.0
  %98 = vmatpush1.msra.mxu0 0.0
  %99 = vmatprep.subr.mxu0 0.0
  %100 = vmatpush1.msra.mxu0 0.0
  %101 = vmatprep.subr.mxu0 0.0
  %102 = vmatpush1.msra.mxu0 0.0
  %103 = vmatprep.subr.mxu0 0.0
  %104 = vmatpush1.msra.mxu0 0.0
  %105 = vmatprep.subr.mxu0 0.0
  %106 = vmatpush1.msra.mxu0 0.0
  %107 = vmatprep.subr.mxu0 0.0
  %108 = vmatpush1.msra.mxu0 %v75
  %109 = vmatprep.subr.mxu0 0.0
  %110 = vmatpush2.msra.mxu0 0.0
  %111 = vmatprep.subr.mxu0 0.0
  %112 = vmatpush2.msra.mxu0 0.0
  %113 = vmatprep.subr.mxu0 0.0
  %114 = vmatpush2.msra.mxu0 0.0
  %115 = vmatprep.subr.mxu0 0.0
  %116 = vmatpush2.msra.mxu0 0.0
  %117 = vmatprep.subr.mxu0 0.0
  %118 = vmatpush2.msra.mxu0 0.0
  %119 = vmatprep.subr.mxu0 0.0
  %120 = vmatpush2.msra.mxu0 0.0
  %121 = vmatprep.subr.mxu0 0.0
  %122 = vmatpush2.msra.mxu0 0.0
  %123 = vmatprep.subr.mxu0 0.0
  %124 = vmatpush2.msra.mxu0 0.0
  %125 = vmatprep.subr.mxu0 0.0
  %126 = vmatpush2.msra.mxu0 0.0
  %127 = vmatprep.subr.mxu0 0.0
  %128 = vmatpush2.msra.mxu0 0.0
  %129 = vmatprep.subr.mxu0 0.0
  %130 = vmatpush2.msra.mxu0 0.0
  %131 = vmatprep.subr.mxu0 0.0
  %132 = vmatpush2.msra.mxu0 0.0
  %133 = vmatprep.subr.mxu0 0.0
  %134 = vmatpush2.msra.mxu0 0.0
  %135 = vmatprep.subr.mxu0 0.0
  %136 = vmatpush2.msra.mxu0 0.0
  %137 = vmatprep.subr.mxu0 0.0
  %138 = vmatpush2.msra.mxu0 0.0
  %139 = vmatprep.subr.mxu0 0.0
  %140 = vmatpush2.msra.mxu0 0.0
  %141 = vmatprep.mubr.f32.mxu0 0.0
  %142 = vmatmul.mubr.f32.gmra.mxu0 %v50
  %v143 = vpop.f32.mrf.mxu0
  %v144 = vadd.f32 %v46, %v143
  %v145 = vpop.f32.mrf.mxu0
  %146 = vmatprep.mubr.f32.mxu0 0.0
  %147 = vmatmul.mubr.f32.gmra.mxu0 %v53
  %v148 = vpop.f32.mrf.mxu0
  %v149 = vadd.f32 %v46, %v148
  %v150 = vpop.f32.mrf.mxu0
  %151 = vmatprep.mubr.f32.mxu0 0.0
  %152 = vmatmul.mubr.f32.gmra.mxu0 %v56
  %v153 = vpop.f32.mrf.mxu0
  %v154 = vadd.f32 %v46, %v153
  %v155 = vpop.f32.mrf.mxu0
  %156 = vmatprep.mubr.f32.mxu0 0.0
  %157 = vmatmul.mubr.f32.gmra.mxu0 %v59
  %v158 = vpop.f32.mrf.mxu0
  %v159 = vadd.f32 %v46, %v158
  %v160 = vpop.f32.mrf.mxu0
  %161 = vmatprep.mubr.f32.mxu0 0.0
  %162 = vmatmul.mubr.f32.gmra.mxu0 %v62
  %v163 = vpop.f32.mrf.mxu0
  %v164 = vadd.f32 %v46, %v163
  %v165 = vpop.f32.mrf.mxu0
  %166 = vmatprep.mubr.f32.mxu0 0.0
  %167 = vmatmul.mubr.f32.gmra.mxu0 %v65
  %v168 = vpop.f32.mrf.mxu0
  %v169 = vadd.f32 %v46, %v168
  %v170 = vpop.f32.mrf.mxu0
  %171 = vmatprep.mubr.f32.mxu0 0.0
  %172 = vmatmul.mubr.f32.gmra.mxu0 %v68
  %v173 = vpop.f32.mrf.mxu0
  %v174 = vadd.f32 %v46, %v173
  %v175 = vpop.f32.mrf.mxu0
  %176 = vmatprep.mubr.f32.mxu0 0.0
  %177 = vmatmul.mubr.f32.gmra.mxu0 %v71
  %v178 = vpop.f32.mrf.mxu0
  %v179 = vadd.f32 %v46, %v178
  %v180 = vpop.f32.mrf.mxu0
  %181 = vdwg.mxu0
  %182 = vst [vmem:[#allocation2] sm:$0xff] %v144
  %183 = vst [vmem:[#allocation2 + $0x8] sm:$0xff] %v149
  %184 = vst [vmem:[#allocation2 + $0x10] sm:$0xff] %v154
  %185 = vst [vmem:[#allocation2 + $0x18] sm:$0xff] %v159
  %186 = vst [vmem:[#allocation2 + $0x20] sm:$0xff] %v164
  %187 = vst [vmem:[#allocation2 + $0x28] sm:$0xff] %v169
  %188 = vst [vmem:[#allocation2 + $0x30] sm:$0xff] %v174
  %189 = vst [vmem:[#allocation2 + $0x38] sm:$0xff] %v179
  %v190 = vld [vmem:[#allocation2] sm:$0xff]
  %v191 = vld [vmem:[%s2] sm:$0xff]
  %v192 = vld [vmem:[%s2 + $0x8] sm:$0xff]
  %v193 = vld [vmem:[%s2 + $0x10] sm:$0xff]
  %v194 = vld [vmem:[%s2 + $0x18] sm:$0xff]
  %vm195 = vcmask 261120
  %v197 = vsel %vm195, 0.0, 0
  %199 = vmatprep.subr.mxu0 0.0
  %200 = vmatpush1.msra.mxu0 0.0
  %201 = vmatprep.subr.mxu0 0.0
  %202 = vmatpush1.msra.mxu0 0.0
  %203 = vmatprep.subr.mxu0 0.0
  %204 = vmatpush1.msra.mxu0 0.0
  %205 = vmatprep.subr.mxu0 0.0
  %206 = vmatpush1.msra.mxu0 0.0
  %207 = vmatprep.subr.mxu0 0.0
  %208 = vmatpush1.msra.mxu0 0.0
  %209 = vmatprep.subr.mxu0 0.0
  %210 = vmatpush1.msra.mxu0 0.0
  %211 = vmatprep.subr.mxu0 0.0
  %212 = vmatpush1.msra.mxu0 0.0
  %213 = vmatprep.subr.mxu0 0.0
  %214 = vmatpush1.msra.mxu0 0.0
  %215 = vmatprep.subr.mxu0 0.0
  %216 = vmatpush1.msra.mxu0 0.0
  %217 = vmatprep.subr.mxu0 0.0
  %218 = vmatpush1.msra.mxu0 0.0
  %219 = vmatprep.subr.mxu0 0.0
  %220 = vmatpush1.msra.mxu0 0.0
  %221 = vmatprep.subr.mxu0 0.0
  %222 = vmatpush1.msra.mxu0 0.0
  %223 = vmatprep.subr.mxu0 0.0
  %224 = vmatpush1.msra.mxu0 %v194
  %225 = vmatprep.subr.mxu0 0.0
  %226 = vmatpush1.msra.mxu0 %v193
  %227 = vmatprep.subr.mxu0 0.0
  %228 = vmatpush1.msra.mxu0 %v192
  %229 = vmatprep.subr.mxu0 0.0
  %230 = vmatpush1.msra.mxu0 %v191
  %231 = vmatprep.subr.mxu0 0.0
  %232 = vmatpush2.msra.mxu0 0.0
  %233 = vmatprep.subr.mxu0 0.0
  %234 = vmatpush2.msra.mxu0 0.0
  %235 = vmatprep.subr.mxu0 0.0
  %236 = vmatpush2.msra.mxu0 0.0
  %237 = vmatprep.subr.mxu0 0.0
  %238 = vmatpush2.msra.mxu0 0.0
  %239 = vmatprep.subr.mxu0 0.0
  %240 = vmatpush2.msra.mxu0 0.0
  %241 = vmatprep.subr.mxu0 0.0
  %242 = vmatpush2.msra.mxu0 0.0
  %243 = vmatprep.subr.mxu0 0.0
  %244 = vmatpush2.msra.mxu0 0.0
  %245 = vmatprep.subr.mxu0 0.0
  %246 = vmatpush2.msra.mxu0 0.0
  %247 = vmatprep.subr.mxu0 0.0
  %248 = vmatpush2.msra.mxu0 0.0
  %249 = vmatprep.subr.mxu0 0.0
  %250 = vmatpush2.msra.mxu0 0.0
  %251 = vmatprep.subr.mxu0 0.0
  %252 = vmatpush2.msra.mxu0 0.0
  %253 = vmatprep.subr.mxu0 0.0
  %254 = vmatpush2.msra.mxu0 0.0
  %255 = vmatprep.subr.mxu0 0.0
  %256 = vmatpush2.msra.mxu0 0.0
  %257 = vmatprep.subr.mxu0 0.0
  %258 = vmatpush2.msra.mxu0 0.0
  %259 = vmatprep.subr.mxu0 0.0
  %260 = vmatpush2.msra.mxu0 0.0
  %261 = vmatprep.subr.mxu0 0.0
  %262 = vmatpush2.msra.mxu0 0.0
  %263 = vmatprep.mubr.f32.mxu0 0.0
  %264 = vmatmul.mubr.f32.gmra.mxu0 %v197
  %v265 = vpop.f32.mrf.mxu0
  %v266 = vadd.f32 0.0, %v265
  %v267 = vpop.f32.mrf.mxu0
  %268 = vdwg.mxu0
  %v269 = vadd.f32 %v190, %v266
  %v270 = vxor.u32 %v269, 2147483648
  %v271 = vmul.f32 %v270, 1.442695
  %v272 = vpow.pop %v271
  %v273 = vadd.f32 %v272, 1.0
  %v274 = vrcp.pop %v273
  %v275 = vmul.f32 1.0, %v274
  %v276 = vtanh.pop %v269
  %v277 = vmul.f32 %v275, 0.0
  %279 = vrot.lane.b32.xlu0 %v276, 32
  %v280 = vpop.permute.xlu0 %279
  %v282 = vmul.f32 %v275, %v280
  %284 = vrot.lane.b32.xlu0 %v282, 32
  %v285 = vpop.permute.xlu0 %284
  %v287 = vadd.f32 %v277, %v285
  %v288 = vtanh.pop %v287
  %290 = vrot.lane.b32.xlu0 %v288, 32
  %v291 = vpop.permute.xlu0 %290
  %v293 = vmul.f32 %v275, %v291
  %295 = vrot.lane.b32.xlu0 %v293, 64
  %v296 = vpop.permute.xlu0 %295
  %298 = vst.msk [vmem:[#allocation3] sm:$0xff] %vm195, %v296
  %s299 = scalar_lea.vmem [#allocation2], 8
  %v300 = vld [vmem:[%s299] sm:$0xff]
  %v301 = vld [vmem:[%s2] sm:$0xff]
  %v302 = vld [vmem:[%s2 + $0x8] sm:$0xff]
  %v303 = vld [vmem:[%s2 + $0x10] sm:$0xff]
  %v304 = vld [vmem:[%s2 + $0x18] sm:$0xff]
  %v305 = vsel %vm195, %v296, 0
  %307 = vmatprep.subr.mxu0 0.0
  %308 = vmatpush1.msra.mxu0 0.0
  %309 = vmatprep.subr.mxu0 0.0
  %310 = vmatpush1.msra.mxu0 0.0
  %311 = vmatprep.subr.mxu0 0.0
  %312 = vmatpush1.msra.mxu0 0.0
  %313 = vmatprep.subr.mxu0 0.0
  %314 = vmatpush1.msra.mxu0 0.0
  %315 = vmatprep.subr.mxu0 0.0
  %316 = vmatpush1.msra.mxu0 0.0
  %317 = vmatprep.subr.mxu0 0.0
  %318 = vmatpush1.msra.mxu0 0.0
  %319 = vmatprep.subr.mxu0 0.0
  %320 = vmatpush1.msra.mxu0 0.0
  %321 = vmatprep.subr.mxu0 0.0
  %322 = vmatpush1.msra.mxu0 0.0
  %323 = vmatprep.subr.mxu0 0.0
  %324 = vmatpush1.msra.mxu0 0.0
  %325 = vmatprep.subr.mxu0 0.0
  %326 = vmatpush1.msra.mxu0 0.0
  %327 = vmatprep.subr.mxu0 0.0
  %328 = vmatpush1.msra.mxu0 0.0
  %329 = vmatprep.subr.mxu0 0.0
  %330 = vmatpush1.msra.mxu0 0.0
  %331 = vmatprep.subr.mxu0 0.0
  %332 = vmatpush1.msra.mxu0 %v304
  %333 = vmatprep.subr.mxu0 0.0
  %334 = vmatpush1.msra.mxu0 %v303
  %335 = vmatprep.subr.mxu0 0.0
  %336 = vmatpush1.msra.mxu0 %v302
  %337 = vmatprep.subr.mxu0 0.0
  %338 = vmatpush1.msra.mxu0 %v301
  %339 = vmatprep.subr.mxu0 0.0
  %340 = vmatpush2.msra.mxu0 0.0
  %341 = vmatprep.subr.mxu0 0.0
  %342 = vmatpush2.msra.mxu0 0.0
  %343 = vmatprep.subr.mxu0 0.0
  %344 = vmatpush2.msra.mxu0 0.0
  %345 = vmatprep.subr.mxu0 0.0
  %346 = vmatpush2.msra.mxu0 0.0
  %347 = vmatprep.subr.mxu0 0.0
  %348 = vmatpush2.msra.mxu0 0.0
  %349 = vmatprep.subr.mxu0 0.0
  %350 = vmatpush2.msra.mxu0 0.0
  %351 = vmatprep.subr.mxu0 0.0
  %352 = vmatpush2.msra.mxu0 0.0
  %353 = vmatprep.subr.mxu0 0.0
  %354 = vmatpush2.msra.mxu0 0.0
  %355 = vmatprep.subr.mxu0 0.0
  %356 = vmatpush2.msra.mxu0 0.0
  %357 = vmatprep.subr.mxu0 0.0
  %358 = vmatpush2.msra.mxu0 0.0
  %359 = vmatprep.subr.mxu0 0.0
  %360 = vmatpush2.msra.mxu0 0.0
  %361 = vmatprep.subr.mxu0 0.0
  %362 = vmatpush2.msra.mxu0 0.0
  %363 = vmatprep.subr.mxu0 0.0
  %364 = vmatpush2.msra.mxu0 0.0
  %365 = vmatprep.subr.mxu0 0.0
  %366 = vmatpush2.msra.mxu0 0.0
  %367 = vmatprep.subr.mxu0 0.0
  %368 = vmatpush2.msra.mxu0 0.0
  %369 = vmatprep.subr.mxu0 0.0
  %370 = vmatpush2.msra.mxu0 0.0
  %371 = vmatprep.mubr.f32.mxu0 0.0
  %372 = vmatmul.mubr.f32.gmra.mxu0 %v305
  %v373 = vpop.f32.mrf.mxu0
  %v374 = vadd.f32 0.0, %v373
  %v375 = vpop.f32.mrf.mxu0
  %376 = vdwg.mxu0
  %v377 = vadd.f32 %v300, %v374
  %v378 = vxor.u32 %v377, 2147483648
  %v379 = vmul.f32 %v378, 1.442695
  %v380 = vpow.pop %v379
  %v381 = vadd.f32 %v380, 1.0
  %v382 = vrcp.pop %v381
  %v383 = vmul.f32 1.0, %v382
  %v384 = vtanh.pop %v377
  %v385 = vmul.f32 %v383, %v287
  %387 = vrot.lane.b32.xlu0 %v384, 32
  %v388 = vpop.permute.xlu0 %387
  %v390 = vmul.f32 %v383, %v388
  %392 = vrot.lane.b32.xlu0 %v390, 32
  %v393 = vpop.permute.xlu0 %392
  %v395 = vadd.f32 %v385, %v393
  %v396 = vtanh.pop %v395
  %398 = vrot.lane.b32.xlu0 %v396, 32
  %v399 = vpop.permute.xlu0 %398
  %v401 = vmul.f32 %v383, %v399
  %403 = vrot.lane.b32.xlu0 %v401, 64
  %v404 = vpop.permute.xlu0 %403
  %s406 = scalar_lea.vmem [#allocation3], 8
  %407 = vst.msk [vmem:[%s406] sm:$0xff] %vm195, %v404
  %s408 = scalar_lea.vmem [#allocation2], 16
  %v409 = vld [vmem:[%s408] sm:$0xff]
  %v410 = vld [vmem:[%s2] sm:$0xff]
  %v411 = vld [vmem:[%s2 + $0x8] sm:$0xff]
  %v412 = vld [vmem:[%s2 + $0x10] sm:$0xff]
  %v413 = vld [vmem:[%s2 + $0x18] sm:$0xff]
  %v414 = vsel %vm195, %v404, 0
  %416 = vmatprep.subr.mxu0 0.0
  %417 = vmatpush1.msra.mxu0 0.0
  %418 = vmatprep.subr.mxu0 0.0
  %419 = vmatpush1.msra.mxu0 0.0
  %420 = vmatprep.subr.mxu0 0.0
  %421 = vmatpush1.msra.mxu0 0.0
  %422 = vmatprep.subr.mxu0 0.0
  %423 = vmatpush1.msra.mxu0 0.0
  %424 = vmatprep.subr.mxu0 0.0
  %425 = vmatpush1.msra.mxu0 0.0
  %426 = vmatprep.subr.mxu0 0.0
  %427 = vmatpush1.msra.mxu0 0.0
  %428 = vmatprep.subr.mxu0 0.0
  %429 = vmatpush1.msra.mxu0 0.0
  %430 = vmatprep.subr.mxu0 0.0
  %431 = vmatpush1.msra.mxu0 0.0
  %432 = vmatprep.subr.mxu0 0.0
  %433 = vmatpush1.msra.mxu0 0.0
  %434 = vmatprep.subr.mxu0 0.0
  %435 = vmatpush1.msra.mxu0 0.0
  %436 = vmatprep.subr.mxu0 0.0
  %437 = vmatpush1.msra.mxu0 0.0
  %438 = vmatprep.subr.mxu0 0.0
  %439 = vmatpush1.msra.mxu0 0.0
  %440 = vmatprep.subr.mxu0 0.0
  %441 = vmatpush1.msra.mxu0 %v413
  %442 = vmatprep.subr.mxu0 0.0
  %443 = vmatpush1.msra.mxu0 %v412
  %444 = vmatprep.subr.mxu0 0.0
  %445 = vmatpush1.msra.mxu0 %v411
  %446 = vmatprep.subr.mxu0 0.0
  %447 = vmatpush1.msra.mxu0 %v410
  %448 = vmatprep.subr.mxu0 0.0
  %449 = vmatpush2.msra.mxu0 0.0
  %450 = vmatprep.subr.mxu0 0.0
  %451 = vmatpush2.msra.mxu0 0.0
  %452 = vmatprep.subr.mxu0 0.0
  %453 = vmatpush2.msra.mxu0 0.0
  %454 = vmatprep.subr.mxu0 0.0
  %455 = vmatpush2.msra.mxu0 0.0
  %456 = vmatprep.subr.mxu0 0.0
  %457 = vmatpush2.msra.mxu0 0.0
  %458 = vmatprep.subr.mxu0 0.0
  %459 = vmatpush2.msra.mxu0 0.0
  %460 = vmatprep.subr.mxu0 0.0
  %461 = vmatpush2.msra.mxu0 0.0
  %462 = vmatprep.subr.mxu0 0.0
  %463 = vmatpush2.msra.mxu0 0.0
  %464 = vmatprep.subr.mxu0 0.0
  %465 = vmatpush2.msra.mxu0 0.0
  %466 = vmatprep.subr.mxu0 0.0
  %467 = vmatpush2.msra.mxu0 0.0
  %468 = vmatprep.subr.mxu0 0.0
  %469 = vmatpush2.msra.mxu0 0.0
  %470 = vmatprep.subr.mxu0 0.0
  %471 = vmatpush2.msra.mxu0 0.0
  %472 = vmatprep.subr.mxu0 0.0
  %473 = vmatpush2.msra.mxu0 0.0
  %474 = vmatprep.subr.mxu0 0.0
  %475 = vmatpush2.msra.mxu0 0.0
  %476 = vmatprep.subr.mxu0 0.0
  %477 = vmatpush2.msra.mxu0 0.0
  %478 = vmatprep.subr.mxu0 0.0
  %479 = vmatpush2.msra.mxu0 0.0
  %480 = vmatprep.mubr.f32.mxu0 0.0
  %481 = vmatmul.mubr.f32.gmra.mxu0 %v414
  %v482 = vpop.f32.mrf.mxu0
  %v483 = vadd.f32 0.0, %v482
  %v484 = vpop.f32.mrf.mxu0
  %485 = vdwg.mxu0
  %v486 = vadd.f32 %v409, %v483
  %v487 = vxor.u32 %v486, 2147483648
  %v488 = vmul.f32 %v487, 1.442695
  %v489 = vpow.pop %v488
  %v490 = vadd.f32 %v489, 1.0
  %v491 = vrcp.pop %v490
  %v492 = vmul.f32 1.0, %v491
  %v493 = vtanh.pop %v486
  %v494 = vmul.f32 %v492, %v395
  %496 = vrot.lane.b32.xlu0 %v493, 32
  %v497 = vpop.permute.xlu0 %496
  %v499 = vmul.f32 %v492, %v497
  %501 = vrot.lane.b32.xlu0 %v499, 32
  %v502 = vpop.permute.xlu0 %501
  %v504 = vadd.f32 %v494, %v502
  %v505 = vtanh.pop %v504
  %507 = vrot.lane.b32.xlu0 %v505, 32
  %v508 = vpop.permute.xlu0 %507
  %v510 = vmul.f32 %v492, %v508
  %512 = vrot.lane.b32.xlu0 %v510, 64
  %v513 = vpop.permute.xlu0 %512
  %s515 = scalar_lea.vmem [#allocation3], 16
  %516 = vst.msk [vmem:[%s515] sm:$0xff] %vm195, %v513
  %s517 = scalar_lea.vmem [#allocation2], 24
  %v518 = vld [vmem:[%s517] sm:$0xff]
  %v519 = vld [vmem:[%s2] sm:$0xff]
  %v520 = vld [vmem:[%s2 + $0x8] sm:$0xff]
  %v521 = vld [vmem:[%s2 + $0x10] sm:$0xff]
  %v522 = vld [vmem:[%s2 + $0x18] sm:$0xff]
  %v523 = vsel %vm195, %v513, 0
  %525 = vmatprep.subr.mxu0 0.0
  %526 = vmatpush1.msra.mxu0 0.0
  %527 = vmatprep.subr.mxu0 0.0
  %528 = vmatpush1.msra.mxu0 0.0
  %529 = vmatprep.subr.mxu0 0.0
  %530 = vmatpush1.msra.mxu0 0.0
  %531 = vmatprep.subr.mxu0 0.0
  %532 = vmatpush1.msra.mxu0 0.0
  %533 = vmatprep.subr.mxu0 0.0
  %534 = vmatpush1.msra.mxu0 0.0
  %535 = vmatprep.subr.mxu0 0.0
  %536 = vmatpush1.msra.mxu0 0.0
  %537 = vmatprep.subr.mxu0 0.0
  %538 = vmatpush1.msra.mxu0 0.0
  %539 = vmatprep.subr.mxu0 0.0
  %540 = vmatpush1.msra.mxu0 0.0
  %541 = vmatprep.subr.mxu0 0.0
  %542 = vmatpush1.msra.mxu0 0.0
  %543 = vmatprep.subr.mxu0 0.0
  %544 = vmatpush1.msra.mxu0 0.0
  %545 = vmatprep.subr.mxu0 0.0
  %546 = vmatpush1.msra.mxu0 0.0
  %547 = vmatprep.subr.mxu0 0.0
  %548 = vmatpush1.msra.mxu0 0.0
  %549 = vmatprep.subr.mxu0 0.0
  %550 = vmatpush1.msra.mxu0 %v522
  %551 = vmatprep.subr.mxu0 0.0
  %552 = vmatpush1.msra.mxu0 %v521
  %553 = vmatprep.subr.mxu0 0.0
  %554 = vmatpush1.msra.mxu0 %v520
  %555 = vmatprep.subr.mxu0 0.0
  %556 = vmatpush1.msra.mxu0 %v519
  %557 = vmatprep.subr.mxu0 0.0
  %558 = vmatpush2.msra.mxu0 0.0
  %559 = vmatprep.subr.mxu0 0.0
  %560 = vmatpush2.msra.mxu0 0.0
  %561 = vmatprep.subr.mxu0 0.0
  %562 = vmatpush2.msra.mxu0 0.0
  %563 = vmatprep.subr.mxu0 0.0
  %564 = vmatpush2.msra.mxu0 0.0
  %565 = vmatprep.subr.mxu0 0.0
  %566 = vmatpush2.msra.mxu0 0.0
  %567 = vmatprep.subr.mxu0 0.0
  %568 = vmatpush2.msra.mxu0 0.0
  %569 = vmatprep.subr.mxu0 0.0
  %570 = vmatpush2.msra.mxu0 0.0
  %571 = vmatprep.subr.mxu0 0.0
  %572 = vmatpush2.msra.mxu0 0.0
  %573 = vmatprep.subr.mxu0 0.0
  %574 = vmatpush2.msra.mxu0 0.0
  %575 = vmatprep.subr.mxu0 0.0
  %576 = vmatpush2.msra.mxu0 0.0
  %577 = vmatprep.subr.mxu0 0.0
  %578 = vmatpush2.msra.mxu0 0.0
  %579 = vmatprep.subr.mxu0 0.0
  %580 = vmatpush2.msra.mxu0 0.0
  %581 = vmatprep.subr.mxu0 0.0
  %582 = vmatpush2.msra.mxu0 0.0
  %583 = vmatprep.subr.mxu0 0.0
  %584 = vmatpush2.msra.mxu0 0.0
  %585 = vmatprep.subr.mxu0 0.0
  %586 = vmatpush2.msra.mxu0 0.0
  %587 = vmatprep.subr.mxu0 0.0
  %588 = vmatpush2.msra.mxu0 0.0
  %589 = vmatprep.mubr.f32.mxu0 0.0
  %590 = vmatmul.mubr.f32.gmra.mxu0 %v523
  %v591 = vpop.f32.mrf.mxu0
  %v592 = vadd.f32 0.0, %v591
  %v593 = vpop.f32.mrf.mxu0
  %594 = vdwg.mxu0
  %v595 = vadd.f32 %v518, %v592
  %v596 = vxor.u32 %v595, 2147483648
  %v597 = vmul.f32 %v596, 1.442695
  %v598 = vpow.pop %v597
  %v599 = vadd.f32 %v598, 1.0
  %v600 = vrcp.pop %v599
  %v601 = vmul.f32 1.0, %v600
  %v602 = vtanh.pop %v595
  %v603 = vmul.f32 %v601, %v504
  %605 = vrot.lane.b32.xlu0 %v602, 32
  %v606 = vpop.permute.xlu0 %605
  %v608 = vmul.f32 %v601, %v606
  %610 = vrot.lane.b32.xlu0 %v608, 32
  %v611 = vpop.permute.xlu0 %610
  %v613 = vadd.f32 %v603, %v611
  %v614 = vtanh.pop %v613
  %616 = vrot.lane.b32.xlu0 %v614, 32
  %v617 = vpop.permute.xlu0 %616
  %v619 = vmul.f32 %v601, %v617
  %621 = vrot.lane.b32.xlu0 %v619, 64
  %v622 = vpop.permute.xlu0 %621
  %s624 = scalar_lea.vmem [#allocation3], 24
  %625 = vst.msk [vmem:[%s624] sm:$0xff] %vm195, %v622
  %s626 = scalar_lea.vmem [#allocation2], 32
  %v627 = vld [vmem:[%s626] sm:$0xff]
  %v628 = vld [vmem:[%s2] sm:$0xff]
  %v629 = vld [vmem:[%s2 + $0x8] sm:$0xff]
  %v630 = vld [vmem:[%s2 + $0x10] sm:$0xff]
  %v631 = vld [vmem:[%s2 + $0x18] sm:$0xff]
  %v632 = vsel %vm195, %v622, 0
  %634 = vmatprep.subr.mxu0 0.0
  %635 = vmatpush1.msra.mxu0 0.0
  %636 = vmatprep.subr.mxu0 0.0
  %637 = vmatpush1.msra.mxu0 0.0
  %638 = vmatprep.subr.mxu0 0.0
  %639 = vmatpush1.msra.mxu0 0.0
  %640 = vmatprep.subr.mxu0 0.0
  %641 = vmatpush1.msra.mxu0 0.0
  %642 = vmatprep.subr.mxu0 0.0
  %643 = vmatpush1.msra.mxu0 0.0
  %644 = vmatprep.subr.mxu0 0.0
  %645 = vmatpush1.msra.mxu0 0.0
  %646 = vmatprep.subr.mxu0 0.0
  %647 = vmatpush1.msra.mxu0 0.0
  %648 = vmatprep.subr.mxu0 0.0
  %649 = vmatpush1.msra.mxu0 0.0
  %650 = vmatprep.subr.mxu0 0.0
  %651 = vmatpush1.msra.mxu0 0.0
  %652 = vmatprep.subr.mxu0 0.0
  %653 = vmatpush1.msra.mxu0 0.0
  %654 = vmatprep.subr.mxu0 0.0
  %655 = vmatpush1.msra.mxu0 0.0
  %656 = vmatprep.subr.mxu0 0.0
  %657 = vmatpush1.msra.mxu0 0.0
  %658 = vmatprep.subr.mxu0 0.0
  %659 = vmatpush1.msra.mxu0 %v631
  %660 = vmatprep.subr.mxu0 0.0
  %661 = vmatpush1.msra.mxu0 %v630
  %662 = vmatprep.subr.mxu0 0.0
  %663 = vmatpush1.msra.mxu0 %v629
  %664 = vmatprep.subr.mxu0 0.0
  %665 = vmatpush1.msra.mxu0 %v628
  %666 = vmatprep.subr.mxu0 0.0
  %667 = vmatpush2.msra.mxu0 0.0
  %668 = vmatprep.subr.mxu0 0.0
  %669 = vmatpush2.msra.mxu0 0.0
  %670 = vmatprep.subr.mxu0 0.0
  %671 = vmatpush2.msra.mxu0 0.0
  %672 = vmatprep.subr.mxu0 0.0
  %673 = vmatpush2.msra.mxu0 0.0
  %674 = vmatprep.subr.mxu0 0.0
  %675 = vmatpush2.msra.mxu0 0.0
  %676 = vmatprep.subr.mxu0 0.0
  %677 = vmatpush2.msra.mxu0 0.0
  %678 = vmatprep.subr.mxu0 0.0
  %679 = vmatpush2.msra.mxu0 0.0
  %680 = vmatprep.subr.mxu0 0.0
  %681 = vmatpush2.msra.mxu0 0.0
  %682 = vmatprep.subr.mxu0 0.0
  %683 = vmatpush2.msra.mxu0 0.0
  %684 = vmatprep.subr.mxu0 0.0
  %685 = vmatpush2.msra.mxu0 0.0
  %686 = vmatprep.subr.mxu0 0.0
  %687 = vmatpush2.msra.mxu0 0.0
  %688 = vmatprep.subr.mxu0 0.0
  %689 = vmatpush2.msra.mxu0 0.0
  %690 = vmatprep.subr.mxu0 0.0
  %691 = vmatpush2.msra.mxu0 0.0
  %692 = vmatprep.subr.mxu0 0.0
  %693 = vmatpush2.msra.mxu0 0.0
  %694 = vmatprep.subr.mxu0 0.0
  %695 = vmatpush2.msra.mxu0 0.0
  %696 = vmatprep.subr.mxu0 0.0
  %697 = vmatpush2.msra.mxu0 0.0
  %698 = vmatprep.mubr.f32.mxu0 0.0
  %699 = vmatmul.mubr.f32.gmra.mxu0 %v632
  %v700 = vpop.f32.mrf.mxu0
  %v701 = vadd.f32 0.0, %v700
  %v702 = vpop.f32.mrf.mxu0
  %703 = vdwg.mxu0
  %v704 = vadd.f32 %v627, %v701
  %v705 = vxor.u32 %v704, 2147483648
  %v706 = vmul.f32 %v705, 1.442695
  %v707 = vpow.pop %v706
  %v708 = vadd.f32 %v707, 1.0
  %v709 = vrcp.pop %v708
  %v710 = vmul.f32 1.0, %v709
  %v711 = vtanh.pop %v704
  %v712 = vmul.f32 %v710, %v613
  %714 = vrot.lane.b32.xlu0 %v711, 32
  %v715 = vpop.permute.xlu0 %714
  %v717 = vmul.f32 %v710, %v715
  %719 = vrot.lane.b32.xlu0 %v717, 32
  %v720 = vpop.permute.xlu0 %719
  %v722 = vadd.f32 %v712, %v720
  %v723 = vtanh.pop %v722
  %725 = vrot.lane.b32.xlu0 %v723, 32
  %v726 = vpop.permute.xlu0 %725
  %v728 = vmul.f32 %v710, %v726
  %730 = vrot.lane.b32.xlu0 %v728, 64
  %v731 = vpop.permute.xlu0 %730
  %s733 = scalar_lea.vmem [#allocation3], 32
  %734 = vst.msk [vmem:[%s733] sm:$0xff] %vm195, %v731
  %s735 = scalar_lea.vmem [#allocation2], 40
  %v736 = vld [vmem:[%s735] sm:$0xff]
  %v737 = vld [vmem:[%s2] sm:$0xff]
  %v738 = vld [vmem:[%s2 + $0x8] sm:$0xff]
  %v739 = vld [vmem:[%s2 + $0x10] sm:$0xff]
  %v740 = vld [vmem:[%s2 + $0x18] sm:$0xff]
  %v741 = vsel %vm195, %v731, 0
  %743 = vmatprep.subr.mxu0 0.0
  %744 = vmatpush1.msra.mxu0 0.0
  %745 = vmatprep.subr.mxu0 0.0
  %746 = vmatpush1.msra.mxu0 0.0
  %747 = vmatprep.subr.mxu0 0.0
  %748 = vmatpush1.msra.mxu0 0.0
  %749 = vmatprep.subr.mxu0 0.0
  %750 = vmatpush1.msra.mxu0 0.0
  %751 = vmatprep.subr.mxu0 0.0
  %752 = vmatpush1.msra.mxu0 0.0
  %753 = vmatprep.subr.mxu0 0.0
  %754 = vmatpush1.msra.mxu0 0.0
  %755 = vmatprep.subr.mxu0 0.0
  %756 = vmatpush1.msra.mxu0 0.0
  %757 = vmatprep.subr.mxu0 0.0
  %758 = vmatpush1.msra.mxu0 0.0
  %759 = vmatprep.subr.mxu0 0.0
  %760 = vmatpush1.msra.mxu0 0.0
  %761 = vmatprep.subr.mxu0 0.0
  %762 = vmatpush1.msra.mxu0 0.0
  %763 = vmatprep.subr.mxu0 0.0
  %764 = vmatpush1.msra.mxu0 0.0
  %765 = vmatprep.subr.mxu0 0.0
  %766 = vmatpush1.msra.mxu0 0.0
  %767 = vmatprep.subr.mxu0 0.0
  %768 = vmatpush1.msra.mxu0 %v740
  %769 = vmatprep.subr.mxu0 0.0
  %770 = vmatpush1.msra.mxu0 %v739
  %771 = vmatprep.subr.mxu0 0.0
  %772 = vmatpush1.msra.mxu0 %v738
  %773 = vmatprep.subr.mxu0 0.0
  %774 = vmatpush1.msra.mxu0 %v737
  %775 = vmatprep.subr.mxu0 0.0
  %776 = vmatpush2.msra.mxu0 0.0
  %777 = vmatprep.subr.mxu0 0.0
  %778 = vmatpush2.msra.mxu0 0.0
  %779 = vmatprep.subr.mxu0 0.0
  %780 = vmatpush2.msra.mxu0 0.0
  %781 = vmatprep.subr.mxu0 0.0
  %782 = vmatpush2.msra.mxu0 0.0
  %783 = vmatprep.subr.mxu0 0.0
  %784 = vmatpush2.msra.mxu0 0.0
  %785 = vmatprep.subr.mxu0 0.0
  %786 = vmatpush2.msra.mxu0 0.0
  %787 = vmatprep.subr.mxu0 0.0
  %788 = vmatpush2.msra.mxu0 0.0
  %789 = vmatprep.subr.mxu0 0.0
  %790 = vmatpush2.msra.mxu0 0.0
  %791 = vmatprep.subr.mxu0 0.0
  %792 = vmatpush2.msra.mxu0 0.0
  %793 = vmatprep.subr.mxu0 0.0
  %794 = vmatpush2.msra.mxu0 0.0
  %795 = vmatprep.subr.mxu0 0.0
  %796 = vmatpush2.msra.mxu0 0.0
  %797 = vmatprep.subr.mxu0 0.0
  %798 = vmatpush2.msra.mxu0 0.0
  %799 = vmatprep.subr.mxu0 0.0
  %800 = vmatpush2.msra.mxu0 0.0
  %801 = vmatprep.subr.mxu0 0.0
  %802 = vmatpush2.msra.mxu0 0.0
  %803 = vmatprep.subr.mxu0 0.0
  %804 = vmatpush2.msra.mxu0 0.0
  %805 = vmatprep.subr.mxu0 0.0
  %806 = vmatpush2.msra.mxu0 0.0
  %807 = vmatprep.mubr.f32.mxu0 0.0
  %808 = vmatmul.mubr.f32.gmra.mxu0 %v741
  %v809 = vpop.f32.mrf.mxu0
  %v810 = vadd.f32 0.0, %v809
  %v811 = vpop.f32.mrf.mxu0
  %812 = vdwg.mxu0
  %v813 = vadd.f32 %v736, %v810
  %v814 = vxor.u32 %v813, 2147483648
  %v815 = vmul.f32 %v814, 1.442695
  %v816 = vpow.pop %v815
  %v817 = vadd.f32 %v816, 1.0
  %v818 = vrcp.pop %v817
  %v819 = vmul.f32 1.0, %v818
  %v820 = vtanh.pop %v813
  %v821 = vmul.f32 %v819, %v722
  %823 = vrot.lane.b32.xlu0 %v820, 32
  %v824 = vpop.permute.xlu0 %823
  %v826 = vmul.f32 %v819, %v824
  %828 = vrot.lane.b32.xlu0 %v826, 32
  %v829 = vpop.permute.xlu0 %828
  %v831 = vadd.f32 %v821, %v829
  %v832 = vtanh.pop %v831
  %834 = vrot.lane.b32.xlu0 %v832, 32
  %v835 = vpop.permute.xlu0 %834
  %v837 = vmul.f32 %v819, %v835
  %839 = vrot.lane.b32.xlu0 %v837, 64
  %v840 = vpop.permute.xlu0 %839
  %s842 = scalar_lea.vmem [#allocation3], 40
  %843 = vst.msk [vmem:[%s842] sm:$0xff] %vm195, %v840
  %s844 = scalar_lea.vmem [#allocation2], 48
  %v845 = vld [vmem:[%s844] sm:$0xff]
  %v846 = vld [vmem:[%s2] sm:$0xff]
  %v847 = vld [vmem:[%s2 + $0x8] sm:$0xff]
  %v848 = vld [vmem:[%s2 + $0x10] sm:$0xff]
  %v849 = vld [vmem:[%s2 + $0x18] sm:$0xff]
  %v850 = vsel %vm195, %v840, 0
  %852 = vmatprep.subr.mxu0 0.0
  %853 = vmatpush1.msra.mxu0 0.0
  %854 = vmatprep.subr.mxu0 0.0
  %855 = vmatpush1.msra.mxu0 0.0
  %856 = vmatprep.subr.mxu0 0.0
  %857 = vmatpush1.msra.mxu0 0.0
  %858 = vmatprep.subr.mxu0 0.0
  %859 = vmatpush1.msra.mxu0 0.0
  %860 = vmatprep.subr.mxu0 0.0
  %861 = vmatpush1.msra.mxu0 0.0
  %862 = vmatprep.subr.mxu0 0.0
  %863 = vmatpush1.msra.mxu0 0.0
  %864 = vmatprep.subr.mxu0 0.0
  %865 = vmatpush1.msra.mxu0 0.0
  %866 = vmatprep.subr.mxu0 0.0
  %867 = vmatpush1.msra.mxu0 0.0
  %868 = vmatprep.subr.mxu0 0.0
  %869 = vmatpush1.msra.mxu0 0.0
  %870 = vmatprep.subr.mxu0 0.0
  %871 = vmatpush1.msra.mxu0 0.0
  %872 = vmatprep.subr.mxu0 0.0
  %873 = vmatpush1.msra.mxu0 0.0
  %874 = vmatprep.subr.mxu0 0.0
  %875 = vmatpush1.msra.mxu0 0.0
  %876 = vmatprep.subr.mxu0 0.0
  %877 = vmatpush1.msra.mxu0 %v849
  %878 = vmatprep.subr.mxu0 0.0
  %879 = vmatpush1.msra.mxu0 %v848
  %880 = vmatprep.subr.mxu0 0.0
  %881 = vmatpush1.msra.mxu0 %v847
  %882 = vmatprep.subr.mxu0 0.0
  %883 = vmatpush1.msra.mxu0 %v846
  %884 = vmatprep.subr.mxu0 0.0
  %885 = vmatpush2.msra.mxu0 0.0
  %886 = vmatprep.subr.mxu0 0.0
  %887 = vmatpush2.msra.mxu0 0.0
  %888 = vmatprep.subr.mxu0 0.0
  %889 = vmatpush2.msra.mxu0 0.0
  %890 = vmatprep.subr.mxu0 0.0
  %891 = vmatpush2.msra.mxu0 0.0
  %892 = vmatprep.subr.mxu0 0.0
  %893 = vmatpush2.msra.mxu0 0.0
  %894 = vmatprep.subr.mxu0 0.0
  %895 = vmatpush2.msra.mxu0 0.0
  %896 = vmatprep.subr.mxu0 0.0
  %897 = vmatpush2.msra.mxu0 0.0
  %898 = vmatprep.subr.mxu0 0.0
  %899 = vmatpush2.msra.mxu0 0.0
  %900 = vmatprep.subr.mxu0 0.0
  %901 = vmatpush2.msra.mxu0 0.0
  %902 = vmatprep.subr.mxu0 0.0
  %903 = vmatpush2.msra.mxu0 0.0
  %904 = vmatprep.subr.mxu0 0.0
  %905 = vmatpush2.msra.mxu0 0.0
  %906 = vmatprep.subr.mxu0 0.0
  %907 = vmatpush2.msra.mxu0 0.0
  %908 = vmatprep.subr.mxu0 0.0
  %909 = vmatpush2.msra.mxu0 0.0
  %910 = vmatprep.subr.mxu0 0.0
  %911 = vmatpush2.msra.mxu0 0.0
  %912 = vmatprep.subr.mxu0 0.0
  %913 = vmatpush2.msra.mxu0 0.0
  %914 = vmatprep.subr.mxu0 0.0
  %915 = vmatpush2.msra.mxu0 0.0
  %916 = vmatprep.mubr.f32.mxu0 0.0
  %917 = vmatmul.mubr.f32.gmra.mxu0 %v850
  %v918 = vpop.f32.mrf.mxu0
  %v919 = vadd.f32 0.0, %v918
  %v920 = vpop.f32.mrf.mxu0
  %921 = vdwg.mxu0
  %v922 = vadd.f32 %v845, %v919
  %v923 = vxor.u32 %v922, 2147483648
  %v924 = vmul.f32 %v923, 1.442695
  %v925 = vpow.pop %v924
  %v926 = vadd.f32 %v925, 1.0
  %v927 = vrcp.pop %v926
  %v928 = vmul.f32 1.0, %v927
  %v929 = vtanh.pop %v922
  %v930 = vmul.f32 %v928, %v831
  %932 = vrot.lane.b32.xlu0 %v929, 32
  %v933 = vpop.permute.xlu0 %932
  %v935 = vmul.f32 %v928, %v933
  %937 = vrot.lane.b32.xlu0 %v935, 32
  %v938 = vpop.permute.xlu0 %937
  %v940 = vadd.f32 %v930, %v938
  %v941 = vtanh.pop %v940
  %943 = vrot.lane.b32.xlu0 %v941, 32
  %v944 = vpop.permute.xlu0 %943
  %v946 = vmul.f32 %v928, %v944
  %948 = vrot.lane.b32.xlu0 %v946, 64
  %v949 = vpop.permute.xlu0 %948
  %s951 = scalar_lea.vmem [#allocation3], 48
  %952 = vst.msk [vmem:[%s951] sm:$0xff] %vm195, %v949
  %s953 = scalar_lea.vmem [#allocation2], 56
  %v954 = vld [vmem:[%s953] sm:$0xff]
  %v955 = vld [vmem:[%s2] sm:$0xff]
  %v956 = vld [vmem:[%s2 + $0x8] sm:$0xff]
  %v957 = vld [vmem:[%s2 + $0x10] sm:$0xff]
  %v958 = vld [vmem:[%s2 + $0x18] sm:$0xff]
  %v959 = vsel %vm195, %v949, 0
  %961 = vmatprep.subr.mxu0 0.0
  %962 = vmatpush1.msra.mxu0 0.0
  %963 = vmatprep.subr.mxu0 0.0
  %964 = vmatpush1.msra.mxu0 0.0
  %965 = vmatprep.subr.mxu0 0.0
  %966 = vmatpush1.msra.mxu0 0.0
  %967 = vmatprep.subr.mxu0 0.0
  %968 = vmatpush1.msra.mxu0 0.0
  %969 = vmatprep.subr.mxu0 0.0
  %970 = vmatpush1.msra.mxu0 0.0
  %971 = vmatprep.subr.mxu0 0.0
  %972 = vmatpush1.msra.mxu0 0.0
  %973 = vmatprep.subr.mxu0 0.0
  %974 = vmatpush1.msra.mxu0 0.0
  %975 = vmatprep.subr.mxu0 0.0
  %976 = vmatpush1.msra.mxu0 0.0
  %977 = vmatprep.subr.mxu0 0.0
  %978 = vmatpush1.msra.mxu0 0.0
  %979 = vmatprep.subr.mxu0 0.0
  %980 = vmatpush1.msra.mxu0 0.0
  %981 = vmatprep.subr.mxu0 0.0
  %982 = vmatpush1.msra.mxu0 0.0
  %983 = vmatprep.subr.mxu0 0.0
  %984 = vmatpush1.msra.mxu0 0.0
  %985 = vmatprep.subr.mxu0 0.0
  %986 = vmatpush1.msra.mxu0 %v958
  %987 = vmatprep.subr.mxu0 0.0
  %988 = vmatpush1.msra.mxu0 %v957
  %989 = vmatprep.subr.mxu0 0.0
  %990 = vmatpush1.msra.mxu0 %v956
  %991 = vmatprep.subr.mxu0 0.0
  %992 = vmatpush1.msra.mxu0 %v955
  %993 = vmatprep.subr.mxu0 0.0
  %994 = vmatpush2.msra.mxu0 0.0
  %995 = vmatprep.subr.mxu0 0.0
  %996 = vmatpush2.msra.mxu0 0.0
  %997 = vmatprep.subr.mxu0 0.0
  %998 = vmatpush2.msra.mxu0 0.0
  %999 = vmatprep.subr.mxu0 0.0
  %1000 = vmatpush2.msra.mxu0 0.0
  %1001 = vmatprep.subr.mxu0 0.0
  %1002 = vmatpush2.msra.mxu0 0.0
  %1003 = vmatprep.subr.mxu0 0.0
  %1004 = vmatpush2.msra.mxu0 0.0
  %1005 = vmatprep.subr.mxu0 0.0
  %1006 = vmatpush2.msra.mxu0 0.0
  %1007 = vmatprep.subr.mxu0 0.0
  %1008 = vmatpush2.msra.mxu0 0.0
  %1009 = vmatprep.subr.mxu0 0.0
  %1010 = vmatpush2.msra.mxu0 0.0
  %1011 = vmatprep.subr.mxu0 0.0
  %1012 = vmatpush2.msra.mxu0 0.0
  %1013 = vmatprep.subr.mxu0 0.0
  %1014 = vmatpush2.msra.mxu0 0.0
  %1015 = vmatprep.subr.mxu0 0.0
  %1016 = vmatpush2.msra.mxu0 0.0
  %1017 = vmatprep.subr.mxu0 0.0
  %1018 = vmatpush2.msra.mxu0 0.0
  %1019 = vmatprep.subr.mxu0 0.0
  %1020 = vmatpush2.msra.mxu0 0.0
  %1021 = vmatprep.subr.mxu0 0.0
  %1022 = vmatpush2.msra.mxu0 0.0
  %1023 = vmatprep.subr.mxu0 0.0
  %1024 = vmatpush2.msra.mxu0 0.0
  %1025 = vmatprep.mubr.f32.mxu0 0.0
  %1026 = vmatmul.mubr.f32.gmra.mxu0 %v959
  %v1027 = vpop.f32.mrf.mxu0
  %v1028 = vadd.f32 0.0, %v1027
  %v1029 = vpop.f32.mrf.mxu0
  %1030 = vdwg.mxu0
  %v1031 = vadd.f32 %v954, %v1028
  %v1032 = vxor.u32 %v1031, 2147483648
  %v1033 = vmul.f32 %v1032, 1.442695
  %v1034 = vpow.pop %v1033
  %v1035 = vadd.f32 %v1034, 1.0
  %v1036 = vrcp.pop %v1035
  %v1037 = vmul.f32 1.0, %v1036
  %v1038 = vtanh.pop %v1031
  %v1039 = vmul.f32 %v1037, %v940
  %1041 = vrot.lane.b32.xlu0 %v1038, 32
  %v1042 = vpop.permute.xlu0 %1041
  %v1044 = vmul.f32 %v1037, %v1042
  %1046 = vrot.lane.b32.xlu0 %v1044, 32
  %v1047 = vpop.permute.xlu0 %1046
  %v1049 = vadd.f32 %v1039, %v1047
  %v1050 = vtanh.pop %v1049
  %1052 = vrot.lane.b32.xlu0 %v1050, 32
  %v1053 = vpop.permute.xlu0 %1052
  %v1055 = vmul.f32 %v1037, %v1053
  %1057 = vrot.lane.b32.xlu0 %v1055, 64
  %v1058 = vpop.permute.xlu0 %1057
  %s1060 = scalar_lea.vmem [#allocation3], 56
  %1061 = vst.msk [vmem:[%s1060] sm:$0xff] %vm195, %v1058
  %v1062 = vld [vmem:[#allocation3] sm:$0xff]
  %v1063 = vld [vmem:[#allocation3 + $0x8] sm:$0xff]
  %v1064 = vld [vmem:[#allocation3 + $0x10] sm:$0xff]
  %v1065 = vld [vmem:[#allocation3 + $0x18] sm:$0xff]
  %v1066 = vld [vmem:[#allocation3 + $0x20] sm:$0xff]
  %v1067 = vld [vmem:[#allocation3 + $0x28] sm:$0xff]
  %v1068 = vld [vmem:[#allocation3 + $0x30] sm:$0xff]
  %v1069 = vld [vmem:[#allocation3 + $0x38] sm:$0xff]
  %v1070 = vld [vmem:[%s4] sm:$0xff]
  %v1071 = vld [vmem:[%s4 + $0x8] sm:$0xff]
  %v1072 = vld [vmem:[%s4 + $0x10] sm:$0xff]
  %v1073 = vld [vmem:[%s4 + $0x18] sm:$0xff]
  %v1074 = vld [vmem:[%s6] sm:$0x1]
  %v1076 = vlaneseq
  %v1077 = vshrl.u32 %v1076, 7
  %v1078 = vsub.s32 0, %v1077
  %v1079 = vrot.slane %v1074, %v1078
  %v1082 = vsel %vm195, %v1062, 0
  %v1085 = vsel %vm195, %v1063, 0
  %v1088 = vsel %vm195, %v1064, 0
  %v1091 = vsel %vm195, %v1065, 0
  %v1094 = vsel %vm195, %v1066, 0
  %v1097 = vsel %vm195, %v1067, 0
  %v1100 = vsel %vm195, %v1068, 0
  %v1103 = vsel %vm195, %v1069, 0
  %1105 = vmatprep.subr.mxu0 0.0
  %1106 = vmatpush1.msra.mxu0 0.0
  %1107 = vmatprep.subr.mxu0 0.0
  %1108 = vmatpush1.msra.mxu0 0.0
  %1109 = vmatprep.subr.mxu0 0.0
  %1110 = vmatpush1.msra.mxu0 0.0
  %1111 = vmatprep.subr.mxu0 0.0
  %1112 = vmatpush1.msra.mxu0 0.0
  %1113 = vmatprep.subr.mxu0 0.0
  %1114 = vmatpush1.msra.mxu0 0.0
  %1115 = vmatprep.subr.mxu0 0.0
  %1116 = vmatpush1.msra.mxu0 0.0
  %1117 = vmatprep.subr.mxu0 0.0
  %1118 = vmatpush1.msra.mxu0 0.0
  %1119 = vmatprep.subr.mxu0 0.0
  %1120 = vmatpush1.msra.mxu0 0.0
  %1121 = vmatprep.subr.mxu0 0.0
  %1122 = vmatpush1.msra.mxu0 0.0
  %1123 = vmatprep.subr.mxu0 0.0
  %1124 = vmatpush1.msra.mxu0 0.0
  %1125 = vmatprep.subr.mxu0 0.0
  %1126 = vmatpush1.msra.mxu0 0.0
  %1127 = vmatprep.subr.mxu0 0.0
  %1128 = vmatpush1.msra.mxu0 0.0
  %1129 = vmatprep.subr.mxu0 0.0
  %1130 = vmatpush1.msra.mxu0 %v1073
  %1131 = vmatprep.subr.mxu0 0.0
  %1132 = vmatpush1.msra.mxu0 %v1072
  %1133 = vmatprep.subr.mxu0 0.0
  %1134 = vmatpush1.msra.mxu0 %v1071
  %1135 = vmatprep.subr.mxu0 0.0
  %1136 = vmatpush1.msra.mxu0 %v1070
  %1137 = vmatprep.subr.mxu0 0.0
  %1138 = vmatpush2.msra.mxu0 0.0
  %1139 = vmatprep.subr.mxu0 0.0
  %1140 = vmatpush2.msra.mxu0 0.0
  %1141 = vmatprep.subr.mxu0 0.0
  %1142 = vmatpush2.msra.mxu0 0.0
  %1143 = vmatprep.subr.mxu0 0.0
  %1144 = vmatpush2.msra.mxu0 0.0
  %1145 = vmatprep.subr.mxu0 0.0
  %1146 = vmatpush2.msra.mxu0 0.0
  %1147 = vmatprep.subr.mxu0 0.0
  %1148 = vmatpush2.msra.mxu0 0.0
  %1149 = vmatprep.subr.mxu0 0.0
  %1150 = vmatpush2.msra.mxu0 0.0
  %1151 = vmatprep.subr.mxu0 0.0
  %1152 = vmatpush2.msra.mxu0 0.0
  %1153 = vmatprep.subr.mxu0 0.0
  %1154 = vmatpush2.msra.mxu0 0.0
  %1155 = vmatprep.subr.mxu0 0.0
  %1156 = vmatpush2.msra.mxu0 0.0
  %1157 = vmatprep.subr.mxu0 0.0
  %1158 = vmatpush2.msra.mxu0 0.0
  %1159 = vmatprep.subr.mxu0 0.0
  %1160 = vmatpush2.msra.mxu0 0.0
  %1161 = vmatprep.subr.mxu0 0.0
  %1162 = vmatpush2.msra.mxu0 0.0
  %1163 = vmatprep.subr.mxu0 0.0
  %1164 = vmatpush2.msra.mxu0 0.0
  %1165 = vmatprep.subr.mxu0 0.0
  %1166 = vmatpush2.msra.mxu0 0.0
  %1167 = vmatprep.subr.mxu0 0.0
  %1168 = vmatpush2.msra.mxu0 0.0
  %1169 = vmatprep.mubr.f32.mxu0 0.0
  %1170 = vmatmul.mubr.f32.gmra.mxu0 %v1082
  %v1171 = vpop.f32.mrf.mxu0
  %v1172 = vadd.f32 %v1079, %v1171
  %v1173 = vpop.f32.mrf.mxu0
  %1174 = vmatprep.mubr.f32.mxu0 0.0
  %1175 = vmatmul.mubr.f32.gmra.mxu0 %v1085
  %v1176 = vpop.f32.mrf.mxu0
  %v1177 = vadd.f32 %v1079, %v1176
  %v1178 = vpop.f32.mrf.mxu0
  %1179 = vmatprep.mubr.f32.mxu0 0.0
  %1180 = vmatmul.mubr.f32.gmra.mxu0 %v1088
  %v1181 = vpop.f32.mrf.mxu0
  %v1182 = vadd.f32 %v1079, %v1181
  %v1183 = vpop.f32.mrf.mxu0
  %1184 = vmatprep.mubr.f32.mxu0 0.0
  %1185 = vmatmul.mubr.f32.gmra.mxu0 %v1091
  %v1186 = vpop.f32.mrf.mxu0
  %v1187 = vadd.f32 %v1079, %v1186
  %v1188 = vpop.f32.mrf.mxu0
  %1189 = vmatprep.mubr.f32.mxu0 0.0
  %1190 = vmatmul.mubr.f32.gmra.mxu0 %v1094
  %v1191 = vpop.f32.mrf.mxu0
  %v1192 = vadd.f32 %v1079, %v1191
  %v1193 = vpop.f32.mrf.mxu0
  %1194 = vmatprep.mubr.f32.mxu0 0.0
  %1195 = vmatmul.mubr.f32.gmra.mxu0 %v1097
  %v1196 = vpop.f32.mrf.mxu0
  %v1197 = vadd.f32 %v1079, %v1196
  %v1198 = vpop.f32.mrf.mxu0
  %1199 = vmatprep.mubr.f32.mxu0 0.0
  %1200 = vmatmul.mubr.f32.gmra.mxu0 %v1100
  %v1201 = vpop.f32.mrf.mxu0
  %v1202 = vadd.f32 %v1079, %v1201
  %v1203 = vpop.f32.mrf.mxu0
  %1204 = vmatprep.mubr.f32.mxu0 0.0
  %1205 = vmatmul.mubr.f32.gmra.mxu0 %v1103
  %v1206 = vpop.f32.mrf.mxu0
  %v1207 = vadd.f32 %v1079, %v1206
  %v1208 = vpop.f32.mrf.mxu0
  %1209 = vdwg.mxu0
  %1210 = vst [vmem:[#allocation4] sm:$0xff] %v1172
  %1211 = vst [vmem:[#allocation4 + $0x8] sm:$0xff] %v1177
  %1212 = vst [vmem:[#allocation4 + $0x10] sm:$0xff] %v1182
  %1213 = vst [vmem:[#allocation4 + $0x18] sm:$0xff] %v1187
  %1214 = vst [vmem:[#allocation4 + $0x20] sm:$0xff] %v1192
  %1215 = vst [vmem:[#allocation4 + $0x28] sm:$0xff] %v1197
  %1216 = vst [vmem:[#allocation4 + $0x30] sm:$0xff] %v1202
  %1217 = vst [vmem:[#allocation4 + $0x38] sm:$0xff] %v1207
  %v1218 = vld [vmem:[#allocation4] sm:$0xff]
  %v1219 = vld [vmem:[%s5] sm:$0xff]
  %v1220 = vld [vmem:[%s5 + $0x8] sm:$0xff]
  %v1221 = vld [vmem:[%s5 + $0x10] sm:$0xff]
  %v1222 = vld [vmem:[%s5 + $0x18] sm:$0xff]
  %1223 = vmatprep.subr.mxu0 0.0
  %1224 = vmatpush1.msra.mxu0 0.0
  %1225 = vmatprep.subr.mxu0 0.0
  %1226 = vmatpush1.msra.mxu0 0.0
  %1227 = vmatprep.subr.mxu0 0.0
  %1228 = vmatpush1.msra.mxu0 0.0
  %1229 = vmatprep.subr.mxu0 0.0
  %1230 = vmatpush1.msra.mxu0 0.0
  %1231 = vmatprep.subr.mxu0 0.0
  %1232 = vmatpush1.msra.mxu0 0.0
  %1233 = vmatprep.subr.mxu0 0.0
  %1234 = vmatpush1.msra.mxu0 0.0
  %1235 = vmatprep.subr.mxu0 0.0
  %1236 = vmatpush1.msra.mxu0 0.0
  %1237 = vmatprep.subr.mxu0 0.0
  %1238 = vmatpush1.msra.mxu0 0.0
  %1239 = vmatprep.subr.mxu0 0.0
  %1240 = vmatpush1.msra.mxu0 0.0
  %1241 = vmatprep.subr.mxu0 0.0
  %1242 = vmatpush1.msra.mxu0 0.0
  %1243 = vmatprep.subr.mxu0 0.0
  %1244 = vmatpush1.msra.mxu0 0.0
  %1245 = vmatprep.subr.mxu0 0.0
  %1246 = vmatpush1.msra.mxu0 0.0
  %1247 = vmatprep.subr.mxu0 0.0
  %1248 = vmatpush1.msra.mxu0 %v1222
  %1249 = vmatprep.subr.mxu0 0.0
  %1250 = vmatpush1.msra.mxu0 %v1221
  %1251 = vmatprep.subr.mxu0 0.0
  %1252 = vmatpush1.msra.mxu0 %v1220
  %1253 = vmatprep.subr.mxu0 0.0
  %1254 = vmatpush1.msra.mxu0 %v1219
  %1255 = vmatprep.subr.mxu0 0.0
  %1256 = vmatpush2.msra.mxu0 0.0
  %1257 = vmatprep.subr.mxu0 0.0
  %1258 = vmatpush2.msra.mxu0 0.0
  %1259 = vmatprep.subr.mxu0 0.0
  %1260 = vmatpush2.msra.mxu0 0.0
  %1261 = vmatprep.subr.mxu0 0.0
  %1262 = vmatpush2.msra.mxu0 0.0
  %1263 = vmatprep.subr.mxu0 0.0
  %1264 = vmatpush2.msra.mxu0 0.0
  %1265 = vmatprep.subr.mxu0 0.0
  %1266 = vmatpush2.msra.mxu0 0.0
  %1267 = vmatprep.subr.mxu0 0.0
  %1268 = vmatpush2.msra.mxu0 0.0
  %1269 = vmatprep.subr.mxu0 0.0
  %1270 = vmatpush2.msra.mxu0 0.0
  %1271 = vmatprep.subr.mxu0 0.0
  %1272 = vmatpush2.msra.mxu0 0.0
  %1273 = vmatprep.subr.mxu0 0.0
  %1274 = vmatpush2.msra.mxu0 0.0
  %1275 = vmatprep.subr.mxu0 0.0
  %1276 = vmatpush2.msra.mxu0 0.0
  %1277 = vmatprep.subr.mxu0 0.0
  %1278 = vmatpush2.msra.mxu0 0.0
  %1279 = vmatprep.subr.mxu0 0.0
  %1280 = vmatpush2.msra.mxu0 0.0
  %1281 = vmatprep.subr.mxu0 0.0
  %1282 = vmatpush2.msra.mxu0 0.0
  %1283 = vmatprep.subr.mxu0 0.0
  %1284 = vmatpush2.msra.mxu0 0.0
  %1285 = vmatprep.subr.mxu0 0.0
  %1286 = vmatpush2.msra.mxu0 0.0
  %1287 = vmatprep.mubr.f32.mxu0 0.0
  %1288 = vmatmul.mubr.f32.gmra.mxu0 %v197
  %v1289 = vpop.f32.mrf.mxu0
  %v1290 = vadd.f32 0.0, %v1289
  %v1291 = vpop.f32.mrf.mxu0
  %1292 = vdwg.mxu0
  %v1293 = vadd.f32 %v1218, %v1290
  %v1294 = vxor.u32 %v1293, 2147483648
  %v1295 = vmul.f32 %v1294, 1.442695
  %v1296 = vpow.pop %v1295
  %v1297 = vadd.f32 %v1296, 1.0
  %v1298 = vrcp.pop %v1297
  %v1299 = vmul.f32 1.0, %v1298
  %v1300 = vtanh.pop %v1293
  %v1301 = vmul.f32 %v1299, 0.0
  %1303 = vrot.lane.b32.xlu0 %v1300, 32
  %v1304 = vpop.permute.xlu0 %1303
  %v1306 = vmul.f32 %v1299, %v1304
  %1308 = vrot.lane.b32.xlu0 %v1306, 32
  %v1309 = vpop.permute.xlu0 %1308
  %v1311 = vadd.f32 %v1301, %v1309
  %v1312 = vtanh.pop %v1311
  %1314 = vrot.lane.b32.xlu0 %v1312, 32
  %v1315 = vpop.permute.xlu0 %1314
  %v1317 = vmul.f32 %v1299, %v1315
  %s1318 = scalar_lea.vmem [#allocation4], 8
  %v1319 = vld [vmem:[%s1318] sm:$0xff]
  %1321 = vrot.lane.b32.xlu0 %v1317, 64
  %v1322 = vpop.permute.xlu0 %1321
  %v1323 = vsel %vm195, %v1322, 0
  %1325 = vmatprep.subr.mxu0 0.0
  %1326 = vmatpush1.msra.mxu0 0.0
  %1327 = vmatprep.subr.mxu0 0.0
  %1328 = vmatpush1.msra.mxu0 0.0
  %1329 = vmatprep.subr.mxu0 0.0
  %1330 = vmatpush1.msra.mxu0 0.0
  %1331 = vmatprep.subr.mxu0 0.0
  %1332 = vmatpush1.msra.mxu0 0.0
  %1333 = vmatprep.subr.mxu0 0.0
  %1334 = vmatpush1.msra.mxu0 0.0
  %1335 = vmatprep.subr.mxu0 0.0
  %1336 = vmatpush1.msra.mxu0 0.0
  %1337 = vmatprep.subr.mxu0 0.0
  %1338 = vmatpush1.msra.mxu0 0.0
  %1339 = vmatprep.subr.mxu0 0.0
  %1340 = vmatpush1.msra.mxu0 0.0
  %1341 = vmatprep.subr.mxu0 0.0
  %1342 = vmatpush1.msra.mxu0 0.0
  %1343 = vmatprep.subr.mxu0 0.0
  %1344 = vmatpush1.msra.mxu0 0.0
  %1345 = vmatprep.subr.mxu0 0.0
  %1346 = vmatpush1.msra.mxu0 0.0
  %1347 = vmatprep.subr.mxu0 0.0
  %1348 = vmatpush1.msra.mxu0 0.0
  %1349 = vmatprep.subr.mxu0 0.0
  %1350 = vmatpush1.msra.mxu0 %v1222
  %1351 = vmatprep.subr.mxu0 0.0
  %1352 = vmatpush1.msra.mxu0 %v1221
  %1353 = vmatprep.subr.mxu0 0.0
  %1354 = vmatpush1.msra.mxu0 %v1220
  %1355 = vmatprep.subr.mxu0 0.0
  %1356 = vmatpush1.msra.mxu0 %v1219
  %1357 = vmatprep.subr.mxu0 0.0
  %1358 = vmatpush2.msra.mxu0 0.0
  %1359 = vmatprep.subr.mxu0 0.0
  %1360 = vmatpush2.msra.mxu0 0.0
  %1361 = vmatprep.subr.mxu0 0.0
  %1362 = vmatpush2.msra.mxu0 0.0
  %1363 = vmatprep.subr.mxu0 0.0
  %1364 = vmatpush2.msra.mxu0 0.0
  %1365 = vmatprep.subr.mxu0 0.0
  %1366 = vmatpush2.msra.mxu0 0.0
  %1367 = vmatprep.subr.mxu0 0.0
  %1368 = vmatpush2.msra.mxu0 0.0
  %1369 = vmatprep.subr.mxu0 0.0
  %1370 = vmatpush2.msra.mxu0 0.0
  %1371 = vmatprep.subr.mxu0 0.0
  %1372 = vmatpush2.msra.mxu0 0.0
  %1373 = vmatprep.subr.mxu0 0.0
  %1374 = vmatpush2.msra.mxu0 0.0
  %1375 = vmatprep.subr.mxu0 0.0
  %1376 = vmatpush2.msra.mxu0 0.0
  %1377 = vmatprep.subr.mxu0 0.0
  %1378 = vmatpush2.msra.mxu0 0.0
  %1379 = vmatprep.subr.mxu0 0.0
  %1380 = vmatpush2.msra.mxu0 0.0
  %1381 = vmatprep.subr.mxu0 0.0
  %1382 = vmatpush2.msra.mxu0 0.0
  %1383 = vmatprep.subr.mxu0 0.0
  %1384 = vmatpush2.msra.mxu0 0.0
  %1385 = vmatprep.subr.mxu0 0.0
  %1386 = vmatpush2.msra.mxu0 0.0
  %1387 = vmatprep.subr.mxu0 0.0
  %1388 = vmatpush2.msra.mxu0 0.0
  %1389 = vmatprep.mubr.f32.mxu0 0.0
  %1390 = vmatmul.mubr.f32.gmra.mxu0 %v1323
  %v1391 = vpop.f32.mrf.mxu0
  %v1392 = vadd.f32 0.0, %v1391
  %v1393 = vpop.f32.mrf.mxu0
  %1394 = vdwg.mxu0
  %v1395 = vadd.f32 %v1319, %v1392
  %v1396 = vxor.u32 %v1395, 2147483648
  %v1397 = vmul.f32 %v1396, 1.442695
  %v1398 = vpow.pop %v1397
  %v1399 = vadd.f32 %v1398, 1.0
  %v1400 = vrcp.pop %v1399
  %v1401 = vmul.f32 1.0, %v1400
  %v1402 = vtanh.pop %v1395
  %v1403 = vmul.f32 %v1401, %v1311
  %1405 = vrot.lane.b32.xlu0 %v1402, 32
  %v1406 = vpop.permute.xlu0 %1405
  %v1408 = vmul.f32 %v1401, %v1406
  %1410 = vrot.lane.b32.xlu0 %v1408, 32
  %v1411 = vpop.permute.xlu0 %1410
  %v1413 = vadd.f32 %v1403, %v1411
  %v1414 = vtanh.pop %v1413
  %1416 = vrot.lane.b32.xlu0 %v1414, 32
  %v1417 = vpop.permute.xlu0 %1416
  %v1419 = vmul.f32 %v1401, %v1417
  %s1420 = scalar_lea.vmem [#allocation4], 16
  %v1421 = vld [vmem:[%s1420] sm:$0xff]
  %1423 = vrot.lane.b32.xlu0 %v1419, 64
  %v1424 = vpop.permute.xlu0 %1423
  %v1425 = vsel %vm195, %v1424, 0
  %1427 = vmatprep.subr.mxu0 0.0
  %1428 = vmatpush1.msra.mxu0 0.0
  %1429 = vmatprep.subr.mxu0 0.0
  %1430 = vmatpush1.msra.mxu0 0.0
  %1431 = vmatprep.subr.mxu0 0.0
  %1432 = vmatpush1.msra.mxu0 0.0
  %1433 = vmatprep.subr.mxu0 0.0
  %1434 = vmatpush1.msra.mxu0 0.0
  %1435 = vmatprep.subr.mxu0 0.0
  %1436 = vmatpush1.msra.mxu0 0.0
  %1437 = vmatprep.subr.mxu0 0.0
  %1438 = vmatpush1.msra.mxu0 0.0
  %1439 = vmatprep.subr.mxu0 0.0
  %1440 = vmatpush1.msra.mxu0 0.0
  %1441 = vmatprep.subr.mxu0 0.0
  %1442 = vmatpush1.msra.mxu0 0.0
  %1443 = vmatprep.subr.mxu0 0.0
  %1444 = vmatpush1.msra.mxu0 0.0
  %1445 = vmatprep.subr.mxu0 0.0
  %1446 = vmatpush1.msra.mxu0 0.0
  %1447 = vmatprep.subr.mxu0 0.0
  %1448 = vmatpush1.msra.mxu0 0.0
  %1449 = vmatprep.subr.mxu0 0.0
  %1450 = vmatpush1.msra.mxu0 0.0
  %1451 = vmatprep.subr.mxu0 0.0
  %1452 = vmatpush1.msra.mxu0 %v1222
  %1453 = vmatprep.subr.mxu0 0.0
  %1454 = vmatpush1.msra.mxu0 %v1221
  %1455 = vmatprep.subr.mxu0 0.0
  %1456 = vmatpush1.msra.mxu0 %v1220
  %1457 = vmatprep.subr.mxu0 0.0
  %1458 = vmatpush1.msra.mxu0 %v1219
  %1459 = vmatprep.subr.mxu0 0.0
  %1460 = vmatpush2.msra.mxu0 0.0
  %1461 = vmatprep.subr.mxu0 0.0
  %1462 = vmatpush2.msra.mxu0 0.0
  %1463 = vmatprep.subr.mxu0 0.0
  %1464 = vmatpush2.msra.mxu0 0.0
  %1465 = vmatprep.subr.mxu0 0.0
  %1466 = vmatpush2.msra.mxu0 0.0
  %1467 = vmatprep.subr.mxu0 0.0
  %1468 = vmatpush2.msra.mxu0 0.0
  %1469 = vmatprep.subr.mxu0 0.0
  %1470 = vmatpush2.msra.mxu0 0.0
  %1471 = vmatprep.subr.mxu0 0.0
  %1472 = vmatpush2.msra.mxu0 0.0
  %1473 = vmatprep.subr.mxu0 0.0
  %1474 = vmatpush2.msra.mxu0 0.0
  %1475 = vmatprep.subr.mxu0 0.0
  %1476 = vmatpush2.msra.mxu0 0.0
  %1477 = vmatprep.subr.mxu0 0.0
  %1478 = vmatpush2.msra.mxu0 0.0
  %1479 = vmatprep.subr.mxu0 0.0
  %1480 = vmatpush2.msra.mxu0 0.0
  %1481 = vmatprep.subr.mxu0 0.0
  %1482 = vmatpush2.msra.mxu0 0.0
  %1483 = vmatprep.subr.mxu0 0.0
  %1484 = vmatpush2.msra.mxu0 0.0
  %1485 = vmatprep.subr.mxu0 0.0
  %1486 = vmatpush2.msra.mxu0 0.0
  %1487 = vmatprep.subr.mxu0 0.0
  %1488 = vmatpush2.msra.mxu0 0.0
  %1489 = vmatprep.subr.mxu0 0.0
  %1490 = vmatpush2.msra.mxu0 0.0
  %1491 = vmatprep.mubr.f32.mxu0 0.0
  %1492 = vmatmul.mubr.f32.gmra.mxu0 %v1425
  %v1493 = vpop.f32.mrf.mxu0
  %v1494 = vadd.f32 0.0, %v1493
  %v1495 = vpop.f32.mrf.mxu0
  %1496 = vdwg.mxu0
  %v1497 = vadd.f32 %v1421, %v1494
  %v1498 = vxor.u32 %v1497, 2147483648
  %v1499 = vmul.f32 %v1498, 1.442695
  %v1500 = vpow.pop %v1499
  %v1501 = vadd.f32 %v1500, 1.0
  %v1502 = vrcp.pop %v1501
  %v1503 = vmul.f32 1.0, %v1502
  %v1504 = vtanh.pop %v1497
  %v1505 = vmul.f32 %v1503, %v1413
  %1507 = vrot.lane.b32.xlu0 %v1504, 32
  %v1508 = vpop.permute.xlu0 %1507
  %v1510 = vmul.f32 %v1503, %v1508
  %1512 = vrot.lane.b32.xlu0 %v1510, 32
  %v1513 = vpop.permute.xlu0 %1512
  %v1515 = vadd.f32 %v1505, %v1513
  %v1516 = vtanh.pop %v1515
  %1518 = vrot.lane.b32.xlu0 %v1516, 32
  %v1519 = vpop.permute.xlu0 %1518
  %v1521 = vmul.f32 %v1503, %v1519
  %s1522 = scalar_lea.vmem [#allocation4], 24
  %v1523 = vld [vmem:[%s1522] sm:$0xff]
  %1525 = vrot.lane.b32.xlu0 %v1521, 64
  %v1526 = vpop.permute.xlu0 %1525
  %v1527 = vsel %vm195, %v1526, 0
  %1529 = vmatprep.subr.mxu0 0.0
  %1530 = vmatpush1.msra.mxu0 0.0
  %1531 = vmatprep.subr.mxu0 0.0
  %1532 = vmatpush1.msra.mxu0 0.0
  %1533 = vmatprep.subr.mxu0 0.0
  %1534 = vmatpush1.msra.mxu0 0.0
  %1535 = vmatprep.subr.mxu0 0.0
  %1536 = vmatpush1.msra.mxu0 0.0
  %1537 = vmatprep.subr.mxu0 0.0
  %1538 = vmatpush1.msra.mxu0 0.0
  %1539 = vmatprep.subr.mxu0 0.0
  %1540 = vmatpush1.msra.mxu0 0.0
  %1541 = vmatprep.subr.mxu0 0.0
  %1542 = vmatpush1.msra.mxu0 0.0
  %1543 = vmatprep.subr.mxu0 0.0
  %1544 = vmatpush1.msra.mxu0 0.0
  %1545 = vmatprep.subr.mxu0 0.0
  %1546 = vmatpush1.msra.mxu0 0.0
  %1547 = vmatprep.subr.mxu0 0.0
  %1548 = vmatpush1.msra.mxu0 0.0
  %1549 = vmatprep.subr.mxu0 0.0
  %1550 = vmatpush1.msra.mxu0 0.0
  %1551 = vmatprep.subr.mxu0 0.0
  %1552 = vmatpush1.msra.mxu0 0.0
  %1553 = vmatprep.subr.mxu0 0.0
  %1554 = vmatpush1.msra.mxu0 %v1222
  %1555 = vmatprep.subr.mxu0 0.0
  %1556 = vmatpush1.msra.mxu0 %v1221
  %1557 = vmatprep.subr.mxu0 0.0
  %1558 = vmatpush1.msra.mxu0 %v1220
  %1559 = vmatprep.subr.mxu0 0.0
  %1560 = vmatpush1.msra.mxu0 %v1219
  %1561 = vmatprep.subr.mxu0 0.0
  %1562 = vmatpush2.msra.mxu0 0.0
  %1563 = vmatprep.subr.mxu0 0.0
  %1564 = vmatpush2.msra.mxu0 0.0
  %1565 = vmatprep.subr.mxu0 0.0
  %1566 = vmatpush2.msra.mxu0 0.0
  %1567 = vmatprep.subr.mxu0 0.0
  %1568 = vmatpush2.msra.mxu0 0.0
  %1569 = vmatprep.subr.mxu0 0.0
  %1570 = vmatpush2.msra.mxu0 0.0
  %1571 = vmatprep.subr.mxu0 0.0
  %1572 = vmatpush2.msra.mxu0 0.0
  %1573 = vmatprep.subr.mxu0 0.0
  %1574 = vmatpush2.msra.mxu0 0.0
  %1575 = vmatprep.subr.mxu0 0.0
  %1576 = vmatpush2.msra.mxu0 0.0
  %1577 = vmatprep.subr.mxu0 0.0
  %1578 = vmatpush2.msra.mxu0 0.0
  %1579 = vmatprep.subr.mxu0 0.0
  %1580 = vmatpush2.msra.mxu0 0.0
  %1581 = vmatprep.subr.mxu0 0.0
  %1582 = vmatpush2.msra.mxu0 0.0
  %1583 = vmatprep.subr.mxu0 0.0
  %1584 = vmatpush2.msra.mxu0 0.0
  %1585 = vmatprep.subr.mxu0 0.0
  %1586 = vmatpush2.msra.mxu0 0.0
  %1587 = vmatprep.subr.mxu0 0.0
  %1588 = vmatpush2.msra.mxu0 0.0
  %1589 = vmatprep.subr.mxu0 0.0
  %1590 = vmatpush2.msra.mxu0 0.0
  %1591 = vmatprep.subr.mxu0 0.0
  %1592 = vmatpush2.msra.mxu0 0.0
  %1593 = vmatprep.mubr.f32.mxu0 0.0
  %1594 = vmatmul.mubr.f32.gmra.mxu0 %v1527
  %v1595 = vpop.f32.mrf.mxu0
  %v1596 = vadd.f32 0.0, %v1595
  %v1597 = vpop.f32.mrf.mxu0
  %1598 = vdwg.mxu0
  %v1599 = vadd.f32 %v1523, %v1596
  %v1600 = vxor.u32 %v1599, 2147483648
  %v1601 = vmul.f32 %v1600, 1.442695
  %v1602 = vpow.pop %v1601
  %v1603 = vadd.f32 %v1602, 1.0
  %v1604 = vrcp.pop %v1603
  %v1605 = vmul.f32 1.0, %v1604
  %v1606 = vtanh.pop %v1599
  %v1607 = vmul.f32 %v1605, %v1515
  %1609 = vrot.lane.b32.xlu0 %v1606, 32
  %v1610 = vpop.permute.xlu0 %1609
  %v1612 = vmul.f32 %v1605, %v1610
  %1614 = vrot.lane.b32.xlu0 %v1612, 32
  %v1615 = vpop.permute.xlu0 %1614
  %v1617 = vadd.f32 %v1607, %v1615
  %v1618 = vtanh.pop %v1617
  %1620 = vrot.lane.b32.xlu0 %v1618, 32
  %v1621 = vpop.permute.xlu0 %1620
  %v1623 = vmul.f32 %v1605, %v1621
  %s1624 = scalar_lea.vmem [#allocation4], 32
  %v1625 = vld [vmem:[%s1624] sm:$0xff]
  %1627 = vrot.lane.b32.xlu0 %v1623, 64
  %v1628 = vpop.permute.xlu0 %1627
  %v1629 = vsel %vm195, %v1628, 0
  %1631 = vmatprep.subr.mxu0 0.0
  %1632 = vmatpush1.msra.mxu0 0.0
  %1633 = vmatprep.subr.mxu0 0.0
  %1634 = vmatpush1.msra.mxu0 0.0
  %1635 = vmatprep.subr.mxu0 0.0
  %1636 = vmatpush1.msra.mxu0 0.0
  %1637 = vmatprep.subr.mxu0 0.0
  %1638 = vmatpush1.msra.mxu0 0.0
  %1639 = vmatprep.subr.mxu0 0.0
  %1640 = vmatpush1.msra.mxu0 0.0
  %1641 = vmatprep.subr.mxu0 0.0
  %1642 = vmatpush1.msra.mxu0 0.0
  %1643 = vmatprep.subr.mxu0 0.0
  %1644 = vmatpush1.msra.mxu0 0.0
  %1645 = vmatprep.subr.mxu0 0.0
  %1646 = vmatpush1.msra.mxu0 0.0
  %1647 = vmatprep.subr.mxu0 0.0
  %1648 = vmatpush1.msra.mxu0 0.0
  %1649 = vmatprep.subr.mxu0 0.0
  %1650 = vmatpush1.msra.mxu0 0.0
  %1651 = vmatprep.subr.mxu0 0.0
  %1652 = vmatpush1.msra.mxu0 0.0
  %1653 = vmatprep.subr.mxu0 0.0
  %1654 = vmatpush1.msra.mxu0 0.0
  %1655 = vmatprep.subr.mxu0 0.0
  %1656 = vmatpush1.msra.mxu0 %v1222
  %1657 = vmatprep.subr.mxu0 0.0
  %1658 = vmatpush1.msra.mxu0 %v1221
  %1659 = vmatprep.subr.mxu0 0.0
  %1660 = vmatpush1.msra.mxu0 %v1220
  %1661 = vmatprep.subr.mxu0 0.0
  %1662 = vmatpush1.msra.mxu0 %v1219
  %1663 = vmatprep.subr.mxu0 0.0
  %1664 = vmatpush2.msra.mxu0 0.0
  %1665 = vmatprep.subr.mxu0 0.0
  %1666 = vmatpush2.msra.mxu0 0.0
  %1667 = vmatprep.subr.mxu0 0.0
  %1668 = vmatpush2.msra.mxu0 0.0
  %1669 = vmatprep.subr.mxu0 0.0
  %1670 = vmatpush2.msra.mxu0 0.0
  %1671 = vmatprep.subr.mxu0 0.0
  %1672 = vmatpush2.msra.mxu0 0.0
  %1673 = vmatprep.subr.mxu0 0.0
  %1674 = vmatpush2.msra.mxu0 0.0
  %1675 = vmatprep.subr.mxu0 0.0
  %1676 = vmatpush2.msra.mxu0 0.0
  %1677 = vmatprep.subr.mxu0 0.0
  %1678 = vmatpush2.msra.mxu0 0.0
  %1679 = vmatprep.subr.mxu0 0.0
  %1680 = vmatpush2.msra.mxu0 0.0
  %1681 = vmatprep.subr.mxu0 0.0
  %1682 = vmatpush2.msra.mxu0 0.0
  %1683 = vmatprep.subr.mxu0 0.0
  %1684 = vmatpush2.msra.mxu0 0.0
  %1685 = vmatprep.subr.mxu0 0.0
  %1686 = vmatpush2.msra.mxu0 0.0
  %1687 = vmatprep.subr.mxu0 0.0
  %1688 = vmatpush2.msra.mxu0 0.0
  %1689 = vmatprep.subr.mxu0 0.0
  %1690 = vmatpush2.msra.mxu0 0.0
  %1691 = vmatprep.subr.mxu0 0.0
  %1692 = vmatpush2.msra.mxu0 0.0
  %1693 = vmatprep.subr.mxu0 0.0
  %1694 = vmatpush2.msra.mxu0 0.0
  %1695 = vmatprep.mubr.f32.mxu0 0.0
  %1696 = vmatmul.mubr.f32.gmra.mxu0 %v1629
  %v1697 = vpop.f32.mrf.mxu0
  %v1698 = vadd.f32 0.0, %v1697
  %v1699 = vpop.f32.mrf.mxu0
  %1700 = vdwg.mxu0
  %v1701 = vadd.f32 %v1625, %v1698
  %v1702 = vxor.u32 %v1701, 2147483648
  %v1703 = vmul.f32 %v1702, 1.442695
  %v1704 = vpow.pop %v1703
  %v1705 = vadd.f32 %v1704, 1.0
  %v1706 = vrcp.pop %v1705
  %v1707 = vmul.f32 1.0, %v1706
  %v1708 = vtanh.pop %v1701
  %v1709 = vmul.f32 %v1707, %v1617
  %1711 = vrot.lane.b32.xlu0 %v1708, 32
  %v1712 = vpop.permute.xlu0 %1711
  %v1714 = vmul.f32 %v1707, %v1712
  %1716 = vrot.lane.b32.xlu0 %v1714, 32
  %v1717 = vpop.permute.xlu0 %1716
  %v1719 = vadd.f32 %v1709, %v1717
  %v1720 = vtanh.pop %v1719
  %1722 = vrot.lane.b32.xlu0 %v1720, 32
  %v1723 = vpop.permute.xlu0 %1722
  %v1725 = vmul.f32 %v1707, %v1723
  %s1726 = scalar_lea.vmem [#allocation4], 40
  %v1727 = vld [vmem:[%s1726] sm:$0xff]
  %1729 = vrot.lane.b32.xlu0 %v1725, 64
  %v1730 = vpop.permute.xlu0 %1729
  %v1731 = vsel %vm195, %v1730, 0
  %1733 = vmatprep.subr.mxu0 0.0
  %1734 = vmatpush1.msra.mxu0 0.0
  %1735 = vmatprep.subr.mxu0 0.0
  %1736 = vmatpush1.msra.mxu0 0.0
  %1737 = vmatprep.subr.mxu0 0.0
  %1738 = vmatpush1.msra.mxu0 0.0
  %1739 = vmatprep.subr.mxu0 0.0
  %1740 = vmatpush1.msra.mxu0 0.0
  %1741 = vmatprep.subr.mxu0 0.0
  %1742 = vmatpush1.msra.mxu0 0.0
  %1743 = vmatprep.subr.mxu0 0.0
  %1744 = vmatpush1.msra.mxu0 0.0
  %1745 = vmatprep.subr.mxu0 0.0
  %1746 = vmatpush1.msra.mxu0 0.0
  %1747 = vmatprep.subr.mxu0 0.0
  %1748 = vmatpush1.msra.mxu0 0.0
  %1749 = vmatprep.subr.mxu0 0.0
  %1750 = vmatpush1.msra.mxu0 0.0
  %1751 = vmatprep.subr.mxu0 0.0
  %1752 = vmatpush1.msra.mxu0 0.0
  %1753 = vmatprep.subr.mxu0 0.0
  %1754 = vmatpush1.msra.mxu0 0.0
  %1755 = vmatprep.subr.mxu0 0.0
  %1756 = vmatpush1.msra.mxu0 0.0
  %1757 = vmatprep.subr.mxu0 0.0
  %1758 = vmatpush1.msra.mxu0 %v1222
  %1759 = vmatprep.subr.mxu0 0.0
  %1760 = vmatpush1.msra.mxu0 %v1221
  %1761 = vmatprep.subr.mxu0 0.0
  %1762 = vmatpush1.msra.mxu0 %v1220
  %1763 = vmatprep.subr.mxu0 0.0
  %1764 = vmatpush1.msra.mxu0 %v1219
  %1765 = vmatprep.subr.mxu0 0.0
  %1766 = vmatpush2.msra.mxu0 0.0
  %1767 = vmatprep.subr.mxu0 0.0
  %1768 = vmatpush2.msra.mxu0 0.0
  %1769 = vmatprep.subr.mxu0 0.0
  %1770 = vmatpush2.msra.mxu0 0.0
  %1771 = vmatprep.subr.mxu0 0.0
  %1772 = vmatpush2.msra.mxu0 0.0
  %1773 = vmatprep.subr.mxu0 0.0
  %1774 = vmatpush2.msra.mxu0 0.0
  %1775 = vmatprep.subr.mxu0 0.0
  %1776 = vmatpush2.msra.mxu0 0.0
  %1777 = vmatprep.subr.mxu0 0.0
  %1778 = vmatpush2.msra.mxu0 0.0
  %1779 = vmatprep.subr.mxu0 0.0
  %1780 = vmatpush2.msra.mxu0 0.0
  %1781 = vmatprep.subr.mxu0 0.0
  %1782 = vmatpush2.msra.mxu0 0.0
  %1783 = vmatprep.subr.mxu0 0.0
  %1784 = vmatpush2.msra.mxu0 0.0
  %1785 = vmatprep.subr.mxu0 0.0
  %1786 = vmatpush2.msra.mxu0 0.0
  %1787 = vmatprep.subr.mxu0 0.0
  %1788 = vmatpush2.msra.mxu0 0.0
  %1789 = vmatprep.subr.mxu0 0.0
  %1790 = vmatpush2.msra.mxu0 0.0
  %1791 = vmatprep.subr.mxu0 0.0
  %1792 = vmatpush2.msra.mxu0 0.0
  %1793 = vmatprep.subr.mxu0 0.0
  %1794 = vmatpush2.msra.mxu0 0.0
  %1795 = vmatprep.subr.mxu0 0.0
  %1796 = vmatpush2.msra.mxu0 0.0
  %1797 = vmatprep.mubr.f32.mxu0 0.0
  %1798 = vmatmul.mubr.f32.gmra.mxu0 %v1731
  %v1799 = vpop.f32.mrf.mxu0
  %v1800 = vadd.f32 0.0, %v1799
  %v1801 = vpop.f32.mrf.mxu0
  %1802 = vdwg.mxu0
  %v1803 = vadd.f32 %v1727, %v1800
  %v1804 = vxor.u32 %v1803, 2147483648
  %v1805 = vmul.f32 %v1804, 1.442695
  %v1806 = vpow.pop %v1805
  %v1807 = vadd.f32 %v1806, 1.0
  %v1808 = vrcp.pop %v1807
  %v1809 = vmul.f32 1.0, %v1808
  %v1810 = vtanh.pop %v1803
  %v1811 = vmul.f32 %v1809, %v1719
  %1813 = vrot.lane.b32.xlu0 %v1810, 32
  %v1814 = vpop.permute.xlu0 %1813
  %v1816 = vmul.f32 %v1809, %v1814
  %1818 = vrot.lane.b32.xlu0 %v1816, 32
  %v1819 = vpop.permute.xlu0 %1818
  %v1821 = vadd.f32 %v1811, %v1819
  %v1822 = vtanh.pop %v1821
  %1824 = vrot.lane.b32.xlu0 %v1822, 32
  %v1825 = vpop.permute.xlu0 %1824
  %v1827 = vmul.f32 %v1809, %v1825
  %s1828 = scalar_lea.vmem [#allocation4], 48
  %v1829 = vld [vmem:[%s1828] sm:$0xff]
  %1831 = vrot.lane.b32.xlu0 %v1827, 64
  %v1832 = vpop.permute.xlu0 %1831
  %v1833 = vsel %vm195, %v1832, 0
  %1835 = vmatprep.subr.mxu0 0.0
  %1836 = vmatpush1.msra.mxu0 0.0
  %1837 = vmatprep.subr.mxu0 0.0
  %1838 = vmatpush1.msra.mxu0 0.0
  %1839 = vmatprep.subr.mxu0 0.0
  %1840 = vmatpush1.msra.mxu0 0.0
  %1841 = vmatprep.subr.mxu0 0.0
  %1842 = vmatpush1.msra.mxu0 0.0
  %1843 = vmatprep.subr.mxu0 0.0
  %1844 = vmatpush1.msra.mxu0 0.0
  %1845 = vmatprep.subr.mxu0 0.0
  %1846 = vmatpush1.msra.mxu0 0.0
  %1847 = vmatprep.subr.mxu0 0.0
  %1848 = vmatpush1.msra.mxu0 0.0
  %1849 = vmatprep.subr.mxu0 0.0
  %1850 = vmatpush1.msra.mxu0 0.0
  %1851 = vmatprep.subr.mxu0 0.0
  %1852 = vmatpush1.msra.mxu0 0.0
  %1853 = vmatprep.subr.mxu0 0.0
  %1854 = vmatpush1.msra.mxu0 0.0
  %1855 = vmatprep.subr.mxu0 0.0
  %1856 = vmatpush1.msra.mxu0 0.0
  %1857 = vmatprep.subr.mxu0 0.0
  %1858 = vmatpush1.msra.mxu0 0.0
  %1859 = vmatprep.subr.mxu0 0.0
  %1860 = vmatpush1.msra.mxu0 %v1222
  %1861 = vmatprep.subr.mxu0 0.0
  %1862 = vmatpush1.msra.mxu0 %v1221
  %1863 = vmatprep.subr.mxu0 0.0
  %1864 = vmatpush1.msra.mxu0 %v1220
  %1865 = vmatprep.subr.mxu0 0.0
  %1866 = vmatpush1.msra.mxu0 %v1219
  %1867 = vmatprep.subr.mxu0 0.0
  %1868 = vmatpush2.msra.mxu0 0.0
  %1869 = vmatprep.subr.mxu0 0.0
  %1870 = vmatpush2.msra.mxu0 0.0
  %1871 = vmatprep.subr.mxu0 0.0
  %1872 = vmatpush2.msra.mxu0 0.0
  %1873 = vmatprep.subr.mxu0 0.0
  %1874 = vmatpush2.msra.mxu0 0.0
  %1875 = vmatprep.subr.mxu0 0.0
  %1876 = vmatpush2.msra.mxu0 0.0
  %1877 = vmatprep.subr.mxu0 0.0
  %1878 = vmatpush2.msra.mxu0 0.0
  %1879 = vmatprep.subr.mxu0 0.0
  %1880 = vmatpush2.msra.mxu0 0.0
  %1881 = vmatprep.subr.mxu0 0.0
  %1882 = vmatpush2.msra.mxu0 0.0
  %1883 = vmatprep.subr.mxu0 0.0
  %1884 = vmatpush2.msra.mxu0 0.0
  %1885 = vmatprep.subr.mxu0 0.0
  %1886 = vmatpush2.msra.mxu0 0.0
  %1887 = vmatprep.subr.mxu0 0.0
  %1888 = vmatpush2.msra.mxu0 0.0
  %1889 = vmatprep.subr.mxu0 0.0
  %1890 = vmatpush2.msra.mxu0 0.0
  %1891 = vmatprep.subr.mxu0 0.0
  %1892 = vmatpush2.msra.mxu0 0.0
  %1893 = vmatprep.subr.mxu0 0.0
  %1894 = vmatpush2.msra.mxu0 0.0
  %1895 = vmatprep.subr.mxu0 0.0
  %1896 = vmatpush2.msra.mxu0 0.0
  %1897 = vmatprep.subr.mxu0 0.0
  %1898 = vmatpush2.msra.mxu0 0.0
  %1899 = vmatprep.mubr.f32.mxu0 0.0
  %1900 = vmatmul.mubr.f32.gmra.mxu0 %v1833
  %v1901 = vpop.f32.mrf.mxu0
  %v1902 = vadd.f32 0.0, %v1901
  %v1903 = vpop.f32.mrf.mxu0
  %1904 = vdwg.mxu0
  %v1905 = vadd.f32 %v1829, %v1902
  %v1906 = vxor.u32 %v1905, 2147483648
  %v1907 = vmul.f32 %v1906, 1.442695
  %v1908 = vpow.pop %v1907
  %v1909 = vadd.f32 %v1908, 1.0
  %v1910 = vrcp.pop %v1909
  %v1911 = vmul.f32 1.0, %v1910
  %v1912 = vtanh.pop %v1905
  %v1913 = vmul.f32 %v1911, %v1821
  %1915 = vrot.lane.b32.xlu0 %v1912, 32
  %v1916 = vpop.permute.xlu0 %1915
  %v1918 = vmul.f32 %v1911, %v1916
  %1920 = vrot.lane.b32.xlu0 %v1918, 32
  %v1921 = vpop.permute.xlu0 %1920
  %v1923 = vadd.f32 %v1913, %v1921
  %v1924 = vtanh.pop %v1923
  %1926 = vrot.lane.b32.xlu0 %v1924, 32
  %v1927 = vpop.permute.xlu0 %1926
  %v1929 = vmul.f32 %v1911, %v1927
  %s1930 = scalar_lea.vmem [#allocation4], 56
  %v1931 = vld [vmem:[%s1930] sm:$0xff]
  %1933 = vrot.lane.b32.xlu0 %v1929, 64
  %v1934 = vpop.permute.xlu0 %1933
  %v1935 = vsel %vm195, %v1934, 0
  %1937 = vmatprep.subr.mxu0 0.0
  %1938 = vmatpush1.msra.mxu0 0.0
  %1939 = vmatprep.subr.mxu0 0.0
  %1940 = vmatpush1.msra.mxu0 0.0
  %1941 = vmatprep.subr.mxu0 0.0
  %1942 = vmatpush1.msra.mxu0 0.0
  %1943 = vmatprep.subr.mxu0 0.0
  %1944 = vmatpush1.msra.mxu0 0.0
  %1945 = vmatprep.subr.mxu0 0.0
  %1946 = vmatpush1.msra.mxu0 0.0
  %1947 = vmatprep.subr.mxu0 0.0
  %1948 = vmatpush1.msra.mxu0 0.0
  %1949 = vmatprep.subr.mxu0 0.0
  %1950 = vmatpush1.msra.mxu0 0.0
  %1951 = vmatprep.subr.mxu0 0.0
  %1952 = vmatpush1.msra.mxu0 0.0
  %1953 = vmatprep.subr.mxu0 0.0
  %1954 = vmatpush1.msra.mxu0 0.0
  %1955 = vmatprep.subr.mxu0 0.0
  %1956 = vmatpush1.msra.mxu0 0.0
  %1957 = vmatprep.subr.mxu0 0.0
  %1958 = vmatpush1.msra.mxu0 0.0
  %1959 = vmatprep.subr.mxu0 0.0
  %1960 = vmatpush1.msra.mxu0 0.0
  %1961 = vmatprep.subr.mxu0 0.0
  %1962 = vmatpush1.msra.mxu0 %v1222
  %1963 = vmatprep.subr.mxu0 0.0
  %1964 = vmatpush1.msra.mxu0 %v1221
  %1965 = vmatprep.subr.mxu0 0.0
  %1966 = vmatpush1.msra.mxu0 %v1220
  %1967 = vmatprep.subr.mxu0 0.0
  %1968 = vmatpush1.msra.mxu0 %v1219
  %1969 = vmatprep.subr.mxu0 0.0
  %1970 = vmatpush2.msra.mxu0 0.0
  %1971 = vmatprep.subr.mxu0 0.0
  %1972 = vmatpush2.msra.mxu0 0.0
  %1973 = vmatprep.subr.mxu0 0.0
  %1974 = vmatpush2.msra.mxu0 0.0
  %1975 = vmatprep.subr.mxu0 0.0
  %1976 = vmatpush2.msra.mxu0 0.0
  %1977 = vmatprep.subr.mxu0 0.0
  %1978 = vmatpush2.msra.mxu0 0.0
  %1979 = vmatprep.subr.mxu0 0.0
  %1980 = vmatpush2.msra.mxu0 0.0
  %1981 = vmatprep.subr.mxu0 0.0
  %1982 = vmatpush2.msra.mxu0 0.0
  %1983 = vmatprep.subr.mxu0 0.0
  %1984 = vmatpush2.msra.mxu0 0.0
  %1985 = vmatprep.subr.mxu0 0.0
  %1986 = vmatpush2.msra.mxu0 0.0
  %1987 = vmatprep.subr.mxu0 0.0
  %1988 = vmatpush2.msra.mxu0 0.0
  %1989 = vmatprep.subr.mxu0 0.0
  %1990 = vmatpush2.msra.mxu0 0.0
  %1991 = vmatprep.subr.mxu0 0.0
  %1992 = vmatpush2.msra.mxu0 0.0
  %1993 = vmatprep.subr.mxu0 0.0
  %1994 = vmatpush2.msra.mxu0 0.0
  %1995 = vmatprep.subr.mxu0 0.0
  %1996 = vmatpush2.msra.mxu0 0.0
  %1997 = vmatprep.subr.mxu0 0.0
  %1998 = vmatpush2.msra.mxu0 0.0
  %1999 = vmatprep.subr.mxu0 0.0
  %2000 = vmatpush2.msra.mxu0 0.0
  %2001 = vmatprep.mubr.f32.mxu0 0.0
  %2002 = vmatmul.mubr.f32.gmra.mxu0 %v1935
  %v2003 = vpop.f32.mrf.mxu0
  %v2004 = vadd.f32 0.0, %v2003
  %v2005 = vpop.f32.mrf.mxu0
  %2006 = vdwg.mxu0
  %v2007 = vadd.f32 %v1931, %v2004
  %v2008 = vxor.u32 %v2007, 2147483648
  %v2009 = vmul.f32 %v2008, 1.442695
  %v2010 = vpow.pop %v2009
  %v2011 = vadd.f32 %v2010, 1.0
  %v2012 = vrcp.pop %v2011
  %v2013 = vmul.f32 1.0, %v2012
  %v2014 = vtanh.pop %v2007
  %v2015 = vmul.f32 %v2013, %v1923
  %2017 = vrot.lane.b32.xlu0 %v2014, 32
  %v2018 = vpop.permute.xlu0 %2017
  %v2020 = vmul.f32 %v2013, %v2018
  %2022 = vrot.lane.b32.xlu0 %v2020, 32
  %v2023 = vpop.permute.xlu0 %2022
  %v2025 = vadd.f32 %v2015, %v2023
  %v2026 = vtanh.pop %v2025
  %2028 = vrot.lane.b32.xlu0 %v2026, 32
  %v2029 = vpop.permute.xlu0 %2028
  %v2031 = vmul.f32 %v2013, %v2029
  %v2032 = vld [vmem:[%s7] sm:$0xff]
  %v2033 = vld [vmem:[%s7 + $0x8] sm:$0xff]
  %v2034 = vld [vmem:[%s7 + $0x10] sm:$0xff]
  %v2035 = vld [vmem:[%s7 + $0x18] sm:$0xff]
  %v2036 = vld [vmem:[%s8] sm:$0x1]
  %v2038 = vlaneseq
  %v2039 = vshrl.u32 %v2038, 7
  %v2040 = vsub.s32 0, %v2039
  %v2041 = vrot.slane %v2036, %v2040
  %2044 = vrot.lane.b32.xlu0 %v2031, 64
  %v2045 = vpop.permute.xlu0 %2044
  %v2046 = vsel %vm195, %v2045, 0
  %2048 = vmatprep.subr.mxu0 0.0
  %2049 = vmatpush1.msra.mxu0 0.0
  %2050 = vmatprep.subr.mxu0 0.0
  %2051 = vmatpush1.msra.mxu0 0.0
  %2052 = vmatprep.subr.mxu0 0.0
  %2053 = vmatpush1.msra.mxu0 0.0
  %2054 = vmatprep.subr.mxu0 0.0
  %2055 = vmatpush1.msra.mxu0 0.0
  %2056 = vmatprep.subr.mxu0 0.0
  %2057 = vmatpush1.msra.mxu0 0.0
  %2058 = vmatprep.subr.mxu0 0.0
  %2059 = vmatpush1.msra.mxu0 0.0
  %2060 = vmatprep.subr.mxu0 0.0
  %2061 = vmatpush1.msra.mxu0 0.0
  %2062 = vmatprep.subr.mxu0 0.0
  %2063 = vmatpush1.msra.mxu0 0.0
  %2064 = vmatprep.subr.mxu0 0.0
  %2065 = vmatpush1.msra.mxu0 0.0
  %2066 = vmatprep.subr.mxu0 0.0
  %2067 = vmatpush1.msra.mxu0 0.0
  %2068 = vmatprep.subr.mxu0 0.0
  %2069 = vmatpush1.msra.mxu0 0.0
  %2070 = vmatprep.subr.mxu0 0.0
  %2071 = vmatpush1.msra.mxu0 0.0
  %2072 = vmatprep.subr.mxu0 0.0
  %2073 = vmatpush1.msra.mxu0 %v2035
  %2074 = vmatprep.subr.mxu0 0.0
  %2075 = vmatpush1.msra.mxu0 %v2034
  %2076 = vmatprep.subr.mxu0 0.0
  %2077 = vmatpush1.msra.mxu0 %v2033
  %2078 = vmatprep.subr.mxu0 0.0
  %2079 = vmatpush1.msra.mxu0 %v2032
  %2080 = vmatprep.subr.mxu0 0.0
  %2081 = vmatpush2.msra.mxu0 0.0
  %2082 = vmatprep.subr.mxu0 0.0
  %2083 = vmatpush2.msra.mxu0 0.0
  %2084 = vmatprep.subr.mxu0 0.0
  %2085 = vmatpush2.msra.mxu0 0.0
  %2086 = vmatprep.subr.mxu0 0.0
  %2087 = vmatpush2.msra.mxu0 0.0
  %2088 = vmatprep.subr.mxu0 0.0
  %2089 = vmatpush2.msra.mxu0 0.0
  %2090 = vmatprep.subr.mxu0 0.0
  %2091 = vmatpush2.msra.mxu0 0.0
  %2092 = vmatprep.subr.mxu0 0.0
  %2093 = vmatpush2.msra.mxu0 0.0
  %2094 = vmatprep.subr.mxu0 0.0
  %2095 = vmatpush2.msra.mxu0 0.0
  %2096 = vmatprep.subr.mxu0 0.0
  %2097 = vmatpush2.msra.mxu0 0.0
  %2098 = vmatprep.subr.mxu0 0.0
  %2099 = vmatpush2.msra.mxu0 0.0
  %2100 = vmatprep.subr.mxu0 0.0
  %2101 = vmatpush2.msra.mxu0 0.0
  %2102 = vmatprep.subr.mxu0 0.0
  %2103 = vmatpush2.msra.mxu0 0.0
  %2104 = vmatprep.subr.mxu0 0.0
  %2105 = vmatpush2.msra.mxu0 0.0
  %2106 = vmatprep.subr.mxu0 0.0
  %2107 = vmatpush2.msra.mxu0 0.0
  %2108 = vmatprep.subr.mxu0 0.0
  %2109 = vmatpush2.msra.mxu0 0.0
  %2110 = vmatprep.subr.mxu0 0.0
  %2111 = vmatpush2.msra.mxu0 0.0
  %2112 = vmatprep.mubr.f32.mxu0 0.0
  %2113 = vmatmul.mubr.f32.gmra.mxu0 %v2046
  %v2114 = vpop.f32.mrf.mxu0
  %v2115 = vadd.f32 %v2041, %v2114
  %v2116 = vpop.f32.mrf.mxu0
  %2117 = vdwg.mxu0
  %vm2118 = vcmask 80896
  %v2119 = vsel %vm2118, %v2115, -inf
  %2120 = vmax.xlane.f32.xlu0 %v2119
  %v2121 = vpop.xlane.xlu0 %2120
  %v2122 = vsub.f32 %v2115, %v2121
  %v2123 = vmul.f32 %v2122, 1.442695
  %v2124 = vpow.pop %v2123
  %v2125 = vsel %vm2118, %v2124, 0.0
  %2126 = vadd.xlane.f32.xlu0 %v2125
  %v2127 = vpop.xlane.xlu0 %2126
  %v2128 = vlog2.pop %v2127
  %v2129 = vmul.f32 %v2128, 0.6931472
  %v2130 = vsub.f32 %v2122, %v2129
  %2131 = vst.msk [vmem:[%s9] sm:$0xff] %vm2118, %v2130
  // Predicated region
  $region38: #{lstmnet_forward_fn.1} parent=0 // pred_check
    _
  $region39: #{lstmnet_forward_fn.1} parent=0 // pred_check_branch
    %2133 = sbr.rel (0) target = $region41
  $region40: #{lstmnet_forward_fn.1} parent=0 // pred_region
    _
  $region41: #{lstmnet_forward_fn.1} parent=0 // pred_fallthru
    _
  // Predicated region
  $region42: #{lstmnet_forward_fn.1} parent=0 // pred_check
    _
  $region43: #{lstmnet_forward_fn.1} parent=0 // pred_check_branch
    %2135 = sbr.rel (0) target = $region45
  $region44: #{lstmnet_forward_fn.1} parent=0 // pred_region
    _
  $region45: #{lstmnet_forward_fn.1} parent=0 // pred_fallthru
    _

</llo_original>
